<compile_context>
chip_gen: v7x
topology: tpu7x:2x2x1
jax: 0.10.0
libtpu: 0.0.40
codegen_flags: <defaults>
</compile_context>

<pallas_src>
import functools

import jax
import jax.numpy as jnp
from jax.experimental import pallas as pl
from jax.experimental.pallas import tpu as pltpu


def _layer_norm_f32(x, a, b, eps):
    """a * (x - mean) / (unbiased_std + eps) + b, in f32 (matches torch .std default)."""
    mean = jnp.mean(x, axis=-1, keepdims=True)
    d = x - mean
    var = jnp.sum(d * d, axis=-1, keepdims=True) / jnp.float32(x.shape[-1] - 1)
    inv = 1.0 / (jnp.sqrt(var) + eps)          # exact: LN scale multiplies everything downstream
    return a * d * inv + b


def _encoder_layer_kernel(x_ref, mask_ref,
                          ln1_a_ref, ln1_b_ref,
                          wq_ref, bq_ref, wkv_ref, bkv_ref, wo_ref, bo_ref,
                          ln2_a_ref, ln2_b_ref,
                          w1_ref, b1_ref, w2_ref, b2_ref,
                          o_ref,
                          k_cache, v_cache,
                          *, num_heads, eps):
    f32, bf16 = jnp.float32, jnp.bfloat16

    qi = pl.program_id(1)
    S, D = x_ref.shape[1], x_ref.shape[2]
    tq = o_ref.shape[1]
    H = num_heads
    dh = D // H

    ln1_a, ln1_b = ln1_a_ref[...], ln1_b_ref[...]

    # ---- once per batch element: LN1 over the full sequence + K/V projection + head split ----
    @pl.when(qi == 0)
    def _():
        xn_f = _layer_norm_f32(x_ref[0].astype(f32), ln1_a, ln1_b, eps)           # (S, D)
        kv = jnp.dot(xn_f.astype(bf16), wkv_ref[...],
                     preferred_element_type=f32) + bkv_ref[...]                   # (S, 2D)
        k, v = kv[:, :D], kv[:, D:]
        # head split happens once per batch element (off the per-tile critical path)
        k_cache[...] = jnp.stack([k[:, h * dh:(h + 1) * dh] for h in range(H)], 0).astype(bf16)
        v_cache[...] = jnp.stack([v[:, h * dh:(h + 1) * dh] for h in range(H)], 0).astype(bf16)

    # ---- sub-layer 1 (per query tile): x + MHA(LN(x), LN(x), LN(x), mask) ----
    row0 = pl.multiple_of(qi * tq, tq)
    xq = x_ref[0, pl.ds(row0, tq), :].astype(f32)                                 # (tq, D)
    xn_q = _layer_norm_f32(xq, ln1_a, ln1_b, eps)
    # 1/sqrt(dh) is already folded into wq / bq by prepare_params().
    q = jnp.dot(xn_q.astype(bf16), wq_ref[...], preferred_element_type=f32) + bq_ref[...]
    q_h = jnp.stack([q[:, h * dh:(h + 1) * dh] for h in range(H)], 0).astype(bf16)  # (H,tq,dh)

    mask = mask_ref[0]                                                            # (1, S)
    s = jnp.einsum("hqd,hkd->hqk", q_h, k_cache[...],
                   preferred_element_type=f32)                                    # (H, tq, S)
    s = jnp.where(mask[None, :, :] > 0.0, s, jnp.float32(-1e9))                   # masked_fill
    m = jnp.max(s, axis=-1, keepdims=True)
    p = jnp.exp(s - m)                      # TODO(synk): bf16 exp on v6e/v7x (2x EUP throughput)
    p = p * pl.reciprocal(jnp.sum(p, axis=-1, keepdims=True), approx=True)        # softmax (f32)
    ctx_h = jnp.einsum("hqk,hkd->hqd", p.astype(bf16), v_cache[...],
                       preferred_element_type=f32)                                # (H, tq, dh)
    ctx = jnp.concatenate([ctx_h[h] for h in range(H)], axis=-1)                  # (tq, D)

    attn = jnp.dot(ctx.astype(bf16), wo_ref[...], preferred_element_type=f32) + bo_ref[...]
    x1 = xq + attn                                  # residual in f32 (dropout = 0, eval mode)

    # ---- sub-layer 2: x1 + W2 relu(W1 LN(x1) + b1) + b2 ----
    xn2 = _layer_norm_f32(x1, ln2_a_ref[...], ln2_b_ref[...], eps)
    hidden = jnp.dot(xn2.astype(bf16), w1_ref[...], preferred_element_type=f32) + b1_ref[...]
    hidden = jnp.maximum(hidden, 0.0)
    ff = jnp.dot(hidden.astype(bf16), w2_ref[...], preferred_element_type=f32) + b2_ref[...]

    o_ref[0] = (x1 + ff).astype(o_ref.dtype)


# -----------------------------------------------------------------------------------
# Wrapper
# -----------------------------------------------------------------------------------
def prepare_params(params, *, num_heads):
    """One-time weight prep (hoisted out of the forward): bf16 weights, fused KV, folded scale."""
    D = params["wq"].shape[0]
    dh = D // num_heads
    scale = 1.0 / (float(dh) ** 0.5)
    bf16, f32 = jnp.bfloat16, jnp.float32
    return {
        "ln1_a": params["ln1_a"].astype(f32), "ln1_b": params["ln1_b"].astype(f32),
        "ln2_a": params["ln2_a"].astype(f32), "ln2_b": params["ln2_b"].astype(f32),
        "wq": (params["wq"] * scale).astype(bf16),
        "bq": (params["bq"] * scale).astype(f32),
        "wkv": jnp.concatenate([params["wk"], params["wv"]], axis=1).astype(bf16),
        "bkv": jnp.concatenate([params["bk"], params["bv"]], axis=1).astype(f32),
        "wo": params["wo"].astype(bf16), "bo": params["bo"].astype(f32),
        "w1": params["ff_w1"].astype(bf16), "b1": params["ff_b1"].astype(f32),
        "w2": params["ff_w2"].astype(bf16), "b2": params["ff_b2"].astype(f32),
    }


def _choose_q_tile(S, max_tile=512):
    # v6e/v7x (256-wide MXU) like tq up to 512; on v5e (128-wide MXU) 256 already fills the
    # pipeline if VMEM is tight.  Falls back to tq = S only when S has no multiple-of-8
    # divisor, in which case the (8,128) block rule forces a full-sequence tile anyway.
    if S <= max_tile:
        return S
    for t in range(max_tile, 0, -8):          # largest multiple-of-8 divisor <= max_tile
        if S % t == 0:
            return t
    return S


def _vmem_limit_bytes(S, D, F, H, tq):
    f32b, bf16b = 4, 2
    dh = D // H
    weights = (D * D + 2 * D * D + D * D + D * F + F * D) * bf16b     # wq, wkv, wo, w1, w2 (x1)
    vectors = (4 * D + F + 3 * D + 4 * D) * f32b                      # biases + LN params
    blocks = 2 * (S * D + S + tq * D) * f32b                          # x, mask, out (2 buffers)
    kv_cache = 2 * H * S * dh * bf16b                                 # K/V scratch
    interm = (2 * S * D + 2 * H * tq * S + 3 * H * tq * dh
              + tq * F + 8 * tq * D) * f32b                           # kv/scores/heads/hidden
    est = weights + vectors + blocks + kv_cache + interm + (4 << 20)
    try:   # generation-aware cap: 128 MiB on v5e/v6e, 64 MiB on v7x
        phys = int(getattr(pltpu.get_tpu_info(), "vmem_capacity_bytes", 128 << 20))
    except Exception:
        phys = 128 << 20
    cap = int(phys * 0.82)          # leave headroom for compiler-internal scratch / semaphores
    return int(min(max(est, 16 << 20), cap))


def encoder_layer(x, mask, prep, *, num_heads, eps=1e-6, q_tile=None):
    """Forward of EncoderLayer.  x: (B, S, D) f32; mask: (B, S) with 1.0 = valid key."""
    B, S, D = x.shape
    F = prep["w1"].shape[1]
    H = num_heads
    assert D % H == 0

    tq = _choose_q_tile(S) if q_tile is None else q_tile
    assert S % tq == 0 and (tq % 8 == 0 or tq == S)
    nq = S // tq

    mask_b = mask.astype(jnp.float32)[:, None, :]                     # (B, 1, S), 1 = keep

    def rep(shape):
        # Grid-invariant operand: constant index_map; single-buffered to halve VMEM footprint.
        n = len(shape)
        idx = lambda b, qi: (0,) * n
        try:
            return pl.BlockSpec(shape, idx, pipeline_mode=pl.Buffered(1))
        except TypeError:                                             # older jax: no pipeline_mode
            return pl.BlockSpec(shape, idx)

    kernel = functools.partial(_encoder_layer_kernel, num_heads=H, eps=eps)
    dh = D // H

    return pl.pallas_call(
        kernel,
        out_shape=jax.ShapeDtypeStruct((B, S, D), x.dtype),
        grid_spec=pltpu.PrefetchScalarGridSpec(
            num_scalar_prefetch=0,
            grid=(B, nq),
            in_specs=[
                pl.BlockSpec((1, S, D), lambda b, qi: (b, 0, 0)),     # x: full seq, resident per b
                pl.BlockSpec((1, 1, S), lambda b, qi: (b, 0, 0)),     # key-padding mask
                rep((1, D)), rep((1, D)),                             # ln1 a_2, b_2
                rep((D, D)), rep((1, D)),                             # Wq (scale folded), bq
                rep((D, 2 * D)), rep((1, 2 * D)),                     # Wkv, bkv
                rep((D, D)), rep((1, D)),                             # Wo, bo
                rep((1, D)), rep((1, D)),                             # ln2 a_2, b_2
                rep((D, F)), rep((1, F)),                             # W1, b1
                rep((F, D)), rep((1, D)),                             # W2, b2
            ],
            out_specs=pl.BlockSpec((1, tq, D), lambda b, qi: (b, qi, 0)),
            scratch_shapes=[
                pltpu.VMEM((H, S, dh), jnp.bfloat16),                 # K cache (per batch elem)
                pltpu.VMEM((H, S, dh), jnp.bfloat16),                 # V cache
            ],
        ),
        compiler_params=pltpu.CompilerParams(
            dimension_semantics=("parallel", "arbitrary"),            # qi carries the K/V cache
            vmem_limit_bytes=_vmem_limit_bytes(S, D, F, H, tq),
        ),
    )(x, mask_b,
      prep["ln1_a"], prep["ln1_b"],
      prep["wq"], prep["bq"], prep["wkv"], prep["bkv"], prep["wo"], prep["bo"],
      prep["ln2_a"], prep["ln2_b"],
      prep["w1"], prep["b1"], prep["w2"], prep["b2"])


def init_params(key, d_model, d_ff):
    ks = jax.random.split(key, 8)
    s = 0.02
    return {
        "ln1_a": jnp.ones((1, d_model), jnp.float32),
        "ln1_b": jnp.zeros((1, d_model), jnp.float32),
        "ln2_a": jnp.ones((1, d_model), jnp.float32),
        "ln2_b": jnp.zeros((1, d_model), jnp.float32),
        "wq": s * jax.random.normal(ks[0], (d_model, d_model), jnp.float32),
        "wk": s * jax.random.normal(ks[1], (d_model, d_model), jnp.float32),
        "wv": s * jax.random.normal(ks[2], (d_model, d_model), jnp.float32),
        "wo": s * jax.random.normal(ks[3], (d_model, d_model), jnp.float32),
        "bq": jnp.zeros((1, d_model), jnp.float32),
        "bk": jnp.zeros((1, d_model), jnp.float32),
        "bv": jnp.zeros((1, d_model), jnp.float32),
        "bo": jnp.zeros((1, d_model), jnp.float32),
        "ff_w1": s * jax.random.normal(ks[4], (d_model, d_ff), jnp.float32),
        "ff_b1": jnp.zeros((1, d_ff), jnp.float32),
        "ff_w2": s * jax.random.normal(ks[5], (d_ff, d_model), jnp.float32),
        "ff_b2": jnp.zeros((1, d_model), jnp.float32),
    }


def _reference(x, mask, params, *, num_heads, eps=1e-6):
    """Pure-JAX f32 reference of the PyTorch forward (eval mode)."""
    def ln(v, a, b):
        mean = v.mean(-1, keepdims=True)
        var = ((v - mean) ** 2).sum(-1, keepdims=True) / (v.shape[-1] - 1)
        return a * (v - mean) / (jnp.sqrt(var) + eps) + b

    B, S, D = x.shape
    H = num_heads
    dh = D // H
    xn = ln(x, params["ln1_a"], params["ln1_b"])
    q = xn @ params["wq"] + params["bq"]
    k = xn @ params["wk"] + params["bk"]
    v = xn @ params["wv"] + params["bv"]
    split = lambda t: t.reshape(B, S, H, dh).transpose(0, 2, 1, 3)
    qh, kh, vh = split(q), split(k), split(v)
    s = jnp.einsum("bhqd,bhkd->bhqk", qh, kh) / jnp.sqrt(jnp.float32(dh))
    s = jnp.where(mask[:, None, None, :] > 0, s, -1e9)
    p = jax.nn.softmax(s, axis=-1)
    ctx = jnp.einsum("bhqk,bhkd->bhqd", p, vh).transpose(0, 2, 1, 3).reshape(B, S, D)
    x1 = x + ctx @ params["wo"] + params["bo"]
    xn2 = ln(x1, params["ln2_a"], params["ln2_b"])
    h = jnp.maximum(xn2 @ params["ff_w1"] + params["ff_b1"], 0.0)
    return x1 + h @ params["ff_w2"] + params["ff_b2"]


if __name__ == "__main__":
    B, S, D, H, F = 2, 16, 32, 4, 64
    key = jax.random.PRNGKey(0)
    kx, kp = jax.random.split(key)

    x = jax.random.normal(kx, (B, S, D), jnp.float32)
    # key-padding mask: second sequence has its last 5 positions padded
    mask = jnp.ones((B, S), jnp.float32).at[1, 11:].set(0.0)

    params = init_params(kp, D, F)
    prep = prepare_params(params, num_heads=H)        # one-time weight prep (hoisted)

    # q_tile=8 -> two query tiles per sequence, exercising the cached-K/V (qi > 0) path.
    fwd = jax.jit(functools.partial(encoder_layer, num_heads=H, q_tile=8))
    out = fwd(x, mask, prep)
    jax.block_until_ready(out)
    assert out.shape == (B, S, D) and out.dtype == jnp.float32

    ref = _reference(x, mask, params, num_heads=H)
    err = float(jnp.max(jnp.abs(out - ref)))
    assert err < 5e-2, f"max abs error vs f32 reference too large: {err}"
    print("KERNEL_OK")
</pallas_src>

<mosaic_0001>
module attributes {stable_mosaic.version = 11 : i64} {
  func.func @_encoder_layer_kernel(%arg0: i32, %arg1: i32, %arg2: memref<1x16x32xf32, #tpu.memory_space<vmem>>, %arg3: memref<1x1x16xf32, #tpu.memory_space<vmem>>, %arg4: memref<1x32xf32, #tpu.memory_space<vmem>>, %arg5: memref<1x32xf32, #tpu.memory_space<vmem>>, %arg6: memref<32x32xbf16, #tpu.memory_space<vmem>>, %arg7: memref<1x32xf32, #tpu.memory_space<vmem>>, %arg8: memref<32x64xbf16, #tpu.memory_space<vmem>>, %arg9: memref<1x64xf32, #tpu.memory_space<vmem>>, %arg10: memref<32x32xbf16, #tpu.memory_space<vmem>>, %arg11: memref<1x32xf32, #tpu.memory_space<vmem>>, %arg12: memref<1x32xf32, #tpu.memory_space<vmem>>, %arg13: memref<1x32xf32, #tpu.memory_space<vmem>>, %arg14: memref<32x64xbf16, #tpu.memory_space<vmem>>, %arg15: memref<1x64xf32, #tpu.memory_space<vmem>>, %arg16: memref<64x32xbf16, #tpu.memory_space<vmem>>, %arg17: memref<1x32xf32, #tpu.memory_space<vmem>>, %arg18: memref<1x8x32xf32, #tpu.memory_space<vmem>>, %arg19: memref<4x16x8xbf16, #tpu.memory_space<vmem>>, %arg20: memref<4x16x8xbf16, #tpu.memory_space<vmem>>) attributes {dimension_semantics = [#tpu.dimension_semantics<parallel>, #tpu.dimension_semantics<arbitrary>], iteration_bounds = array<i64: 2, 2>, scalar_prefetch = 0 : i64, scratch_operands = 2 : i64, tpu.core_type = #tpu.core_type<tc>, window_params = [{transform_indices = @transform_0, window_bounds = array<i64: 1, 16, 32>}, {transform_indices = @transform_1, window_bounds = array<i64: 1, 1, 16>}, {pipeline_mode = #tpu.pipeline_mode<synchronous>, transform_indices = @transform_2, window_bounds = array<i64: 1, 32>}, {pipeline_mode = #tpu.pipeline_mode<synchronous>, transform_indices = @transform_3, window_bounds = array<i64: 1, 32>}, {pipeline_mode = #tpu.pipeline_mode<synchronous>, transform_indices = @transform_4, window_bounds = array<i64: 32, 32>}, {pipeline_mode = #tpu.pipeline_mode<synchronous>, transform_indices = @transform_5, window_bounds = array<i64: 1, 32>}, {pipeline_mode = #tpu.pipeline_mode<synchronous>, transform_indices = @transform_6, window_bounds = array<i64: 32, 64>}, {pipeline_mode = #tpu.pipeline_mode<synchronous>, transform_indices = @transform_7, window_bounds = array<i64: 1, 64>}, {pipeline_mode = #tpu.pipeline_mode<synchronous>, transform_indices = @transform_8, window_bounds = array<i64: 32, 32>}, {pipeline_mode = #tpu.pipeline_mode<synchronous>, transform_indices = @transform_9, window_bounds = array<i64: 1, 32>}, {pipeline_mode = #tpu.pipeline_mode<synchronous>, transform_indices = @transform_10, window_bounds = array<i64: 1, 32>}, {pipeline_mode = #tpu.pipeline_mode<synchronous>, transform_indices = @transform_11, window_bounds = array<i64: 1, 32>}, {pipeline_mode = #tpu.pipeline_mode<synchronous>, transform_indices = @transform_12, window_bounds = array<i64: 32, 64>}, {pipeline_mode = #tpu.pipeline_mode<synchronous>, transform_indices = @transform_13, window_bounds = array<i64: 1, 64>}, {pipeline_mode = #tpu.pipeline_mode<synchronous>, transform_indices = @transform_14, window_bounds = array<i64: 64, 32>}, {pipeline_mode = #tpu.pipeline_mode<synchronous>, transform_indices = @transform_15, window_bounds = array<i64: 1, 32>}, {transform_indices = @transform_16, window_bounds = array<i64: 1, 8, 32>}]} {
    %c0 = arith.constant 0 : index
    %c0_0 = arith.constant 0 : index
    %0 = vector.load %arg4[%c0, %c0_0] : memref<1x32xf32, #tpu.memory_space<vmem>>, vector<1x32xf32>
    %c0_1 = arith.constant 0 : index
    %c0_2 = arith.constant 0 : index
    %1 = vector.load %arg5[%c0_1, %c0_2] : memref<1x32xf32, #tpu.memory_space<vmem>>, vector<1x32xf32>
    %c0_i32 = arith.constant 0 : i32
    %2 = arith.cmpi eq, %arg1, %c0_i32 : i32
    %3 = arith.extui %2 : i1 to i32
    %c0_i32_3 = arith.constant 0 : i32
    %4 = arith.cmpi ne, %3, %c0_i32_3 : i32
    scf.if %4 {
      %c0_60 = arith.constant 0 : index
      %c0_61 = arith.constant 0 : index
      %c0_62 = arith.constant 0 : index
      %130 = vector.load %arg2[%c0_60, %c0_61, %c0_62] : memref<1x16x32xf32, #tpu.memory_space<vmem>>, vector<1x16x32xf32>
      %131 = vector.shape_cast %130 : vector<1x16x32xf32> to vector<16x32xf32>
      %cst_63 = arith.constant dense<0.000000e+00> : vector<16xf32>
      %132 = vector.multi_reduction <add>, %131, %cst_63 [1] : vector<16x32xf32> to vector<16xf32>
      %133 = vector.shape_cast %132 : vector<16xf32> to vector<16x1xf32>
      %cst_64 = arith.constant 3.200000e+01 : f32
      %134 = vector.broadcast %cst_64 : f32 to vector<16x1xf32>
      %135 = arith.divf %133, %134 : vector<16x1xf32>
      %136 = vector.broadcast %135 : vector<16x1xf32> to vector<16x32xf32>
      %137 = arith.subf %131, %136 : vector<16x32xf32>
      %138 = arith.mulf %137, %137 : vector<16x32xf32>
      %cst_65 = arith.constant dense<0.000000e+00> : vector<16xf32>
      %139 = vector.multi_reduction <add>, %138, %cst_65 [1] : vector<16x32xf32> to vector<16xf32>
      %140 = vector.shape_cast %139 : vector<16xf32> to vector<16x1xf32>
      %cst_66 = arith.constant 3.100000e+01 : f32
      %141 = vector.broadcast %cst_66 : f32 to vector<16x1xf32>
      %142 = arith.divf %140, %141 : vector<16x1xf32>
      %143 = math.sqrt %142 : vector<16x1xf32>
      %cst_67 = arith.constant 9.99999997E-7 : f32
      %144 = vector.broadcast %cst_67 : f32 to vector<16x1xf32>
      %145 = arith.addf %143, %144 : vector<16x1xf32>
      %cst_68 = arith.constant 1.000000e+00 : f32
      %146 = vector.broadcast %cst_68 : f32 to vector<16x1xf32>
      %147 = arith.divf %146, %145 : vector<16x1xf32>
      %148 = vector.broadcast %0 : vector<1x32xf32> to vector<16x32xf32>
      %149 = arith.mulf %148, %137 : vector<16x32xf32>
      %150 = vector.broadcast %147 : vector<16x1xf32> to vector<16x32xf32>
      %151 = arith.mulf %149, %150 : vector<16x32xf32>
      %152 = vector.broadcast %1 : vector<1x32xf32> to vector<16x32xf32>
      %153 = arith.addf %151, %152 : vector<16x32xf32>
      %154 = arith.truncf %153 : vector<16x32xf32> to vector<16x32xbf16>
      %c0_69 = arith.constant 0 : index
      %c0_70 = arith.constant 0 : index
      %155 = vector.load %arg8[%c0_69, %c0_70] : memref<32x64xbf16, #tpu.memory_space<vmem>>, vector<32x64xbf16>
      %cst_71 = arith.constant dense<0.000000e+00> : vector<16x64xf32>
      %156 = tpu.matmul %154, %155, %cst_71 {dimension_numbers = #tpu.dot_dimension_numbers<[1], [0], [0], [1], [0, 0, 1, 1], [], []>} : vector<16x32xbf16>, vector<32x64xbf16>, vector<16x64xf32> -> vector<16x64xf32>
      %c0_72 = arith.constant 0 : index
      %c0_73 = arith.constant 0 : index
      %157 = vector.load %arg9[%c0_72, %c0_73] : memref<1x64xf32, #tpu.memory_space<vmem>>, vector<1x64xf32>
      %158 = vector.broadcast %157 : vector<1x64xf32> to vector<16x64xf32>
      %159 = arith.addf %156, %158 : vector<16x64xf32>
      %160 = vector.extract_strided_slice %159 {offsets = [0, 0], sizes = [16, 32], strides = [1, 1]} : vector<16x64xf32> to vector<16x32xf32>
      %161 = vector.extract_strided_slice %159 {offsets = [0, 32], sizes = [16, 32], strides = [1, 1]} : vector<16x64xf32> to vector<16x32xf32>
      %162 = vector.extract_strided_slice %160 {offsets = [0, 0], sizes = [16, 8], strides = [1, 1]} : vector<16x32xf32> to vector<16x8xf32>
      %163 = vector.extract_strided_slice %160 {offsets = [0, 8], sizes = [16, 8], strides = [1, 1]} : vector<16x32xf32> to vector<16x8xf32>
      %164 = vector.extract_strided_slice %160 {offsets = [0, 16], sizes = [16, 8], strides = [1, 1]} : vector<16x32xf32> to vector<16x8xf32>
      %165 = vector.extract_strided_slice %160 {offsets = [0, 24], sizes = [16, 8], strides = [1, 1]} : vector<16x32xf32> to vector<16x8xf32>
      %166 = vector.shape_cast %162 : vector<16x8xf32> to vector<1x16x8xf32>
      %167 = vector.shape_cast %163 : vector<16x8xf32> to vector<1x16x8xf32>
      %168 = vector.shape_cast %164 : vector<16x8xf32> to vector<1x16x8xf32>
      %169 = vector.shape_cast %165 : vector<16x8xf32> to vector<1x16x8xf32>
      %170 = tpu.concatenate %166, %167, %168, %169 in 0 : vector<1x16x8xf32>, vector<1x16x8xf32>, vector<1x16x8xf32>, vector<1x16x8xf32> -> vector<4x16x8xf32>
      %171 = arith.truncf %170 : vector<4x16x8xf32> to vector<4x16x8xbf16>
      %c0_74 = arith.constant 0 : index
      %c0_75 = arith.constant 0 : index
      %c0_76 = arith.constant 0 : index
      %172 = vector.load %arg19[%c0_74, %c0_75, %c0_76] : memref<4x16x8xbf16, #tpu.memory_space<vmem>>, vector<4x16x8xbf16>
      tpu.vector_store %arg19[%c0_74, %c0_75, %c0_76], %171 {strides = array<i32>} : memref<4x16x8xbf16, #tpu.memory_space<vmem>>, vector<4x16x8xbf16>,
      %173 = vector.extract_strided_slice %161 {offsets = [0, 0], sizes = [16, 8], strides = [1, 1]} : vector<16x32xf32> to vector<16x8xf32>
      %174 = vector.extract_strided_slice %161 {offsets = [0, 8], sizes = [16, 8], strides = [1, 1]} : vector<16x32xf32> to vector<16x8xf32>
      %175 = vector.extract_strided_slice %161 {offsets = [0, 16], sizes = [16, 8], strides = [1, 1]} : vector<16x32xf32> to vector<16x8xf32>
      %176 = vector.extract_strided_slice %161 {offsets = [0, 24], sizes = [16, 8], strides = [1, 1]} : vector<16x32xf32> to vector<16x8xf32>
      %177 = vector.shape_cast %173 : vector<16x8xf32> to vector<1x16x8xf32>
      %178 = vector.shape_cast %174 : vector<16x8xf32> to vector<1x16x8xf32>
      %179 = vector.shape_cast %175 : vector<16x8xf32> to vector<1x16x8xf32>
      %180 = vector.shape_cast %176 : vector<16x8xf32> to vector<1x16x8xf32>
      %181 = tpu.concatenate %177, %178, %179, %180 in 0 : vector<1x16x8xf32>, vector<1x16x8xf32>, vector<1x16x8xf32>, vector<1x16x8xf32> -> vector<4x16x8xf32>
      %182 = arith.truncf %181 : vector<4x16x8xf32> to vector<4x16x8xbf16>
      %c0_77 = arith.constant 0 : index
      %c0_78 = arith.constant 0 : index
      %c0_79 = arith.constant 0 : index
      %183 = vector.load %arg20[%c0_77, %c0_78, %c0_79] : memref<4x16x8xbf16, #tpu.memory_space<vmem>>, vector<4x16x8xbf16>
      tpu.vector_store %arg20[%c0_77, %c0_78, %c0_79], %182 {strides = array<i32>} : memref<4x16x8xbf16, #tpu.memory_space<vmem>>, vector<4x16x8xbf16>,
    } else {
    }
    %c8_i32 = arith.constant 8 : i32
    %5 = arith.muli %arg1, %c8_i32 : i32
    %6 = tpu.assume_multiple %5, 8 : i32
    %c0_4 = arith.constant 0 : index
    %7 = arith.index_cast %6 : i32 to index
    %c0_5 = arith.constant 0 : index
    %8 = vector.load %arg2[%c0_4, %7, %c0_5] : memref<1x16x32xf32, #tpu.memory_space<vmem>>, vector<1x8x32xf32>
    %9 = vector.shape_cast %8 : vector<1x8x32xf32> to vector<8x32xf32>
    %cst = arith.constant dense<0.000000e+00> : vector<8xf32>
    %10 = vector.multi_reduction <add>, %9, %cst [1] : vector<8x32xf32> to vector<8xf32>
    %11 = vector.shape_cast %10 : vector<8xf32> to vector<8x1xf32>
    %cst_6 = arith.constant 3.200000e+01 : f32
    %12 = vector.broadcast %cst_6 : f32 to vector<8x1xf32>
    %13 = arith.divf %11, %12 : vector<8x1xf32>
    %14 = vector.broadcast %13 : vector<8x1xf32> to vector<8x32xf32>
    %15 = arith.subf %9, %14 : vector<8x32xf32>
    %16 = arith.mulf %15, %15 : vector<8x32xf32>
    %cst_7 = arith.constant dense<0.000000e+00> : vector<8xf32>
    %17 = vector.multi_reduction <add>, %16, %cst_7 [1] : vector<8x32xf32> to vector<8xf32>
    %18 = vector.shape_cast %17 : vector<8xf32> to vector<8x1xf32>
    %cst_8 = arith.constant 3.100000e+01 : f32
    %19 = vector.broadcast %cst_8 : f32 to vector<8x1xf32>
    %20 = arith.divf %18, %19 : vector<8x1xf32>
    %21 = math.sqrt %20 : vector<8x1xf32>
    %cst_9 = arith.constant 9.99999997E-7 : f32
    %22 = vector.broadcast %cst_9 : f32 to vector<8x1xf32>
    %23 = arith.addf %21, %22 : vector<8x1xf32>
    %cst_10 = arith.constant 1.000000e+00 : f32
    %24 = vector.broadcast %cst_10 : f32 to vector<8x1xf32>
    %25 = arith.divf %24, %23 : vector<8x1xf32>
    %26 = vector.broadcast %0 : vector<1x32xf32> to vector<8x32xf32>
    %27 = arith.mulf %26, %15 : vector<8x32xf32>
    %28 = vector.broadcast %25 : vector<8x1xf32> to vector<8x32xf32>
    %29 = arith.mulf %27, %28 : vector<8x32xf32>
    %30 = vector.broadcast %1 : vector<1x32xf32> to vector<8x32xf32>
    %31 = arith.addf %29, %30 : vector<8x32xf32>
    %32 = arith.truncf %31 : vector<8x32xf32> to vector<8x32xbf16>
    %c0_11 = arith.constant 0 : index
    %c0_12 = arith.constant 0 : index
    %33 = vector.load %arg6[%c0_11, %c0_12] : memref<32x32xbf16, #tpu.memory_space<vmem>>, vector<32x32xbf16>
    %cst_13 = arith.constant dense<0.000000e+00> : vector<8x32xf32>
    %34 = tpu.matmul %32, %33, %cst_13 {dimension_numbers = #tpu.dot_dimension_numbers<[1], [0], [0], [1], [0, 0, 1, 1], [], []>} : vector<8x32xbf16>, vector<32x32xbf16>, vector<8x32xf32> -> vector<8x32xf32>
    %c0_14 = arith.constant 0 : index
    %c0_15 = arith.constant 0 : index
    %35 = vector.load %arg7[%c0_14, %c0_15] : memref<1x32xf32, #tpu.memory_space<vmem>>, vector<1x32xf32>
    %36 = vector.broadcast %35 : vector<1x32xf32> to vector<8x32xf32>
    %37 = arith.addf %34, %36 : vector<8x32xf32>
    %38 = vector.extract_strided_slice %37 {offsets = [0, 0], sizes = [8, 8], strides = [1, 1]} : vector<8x32xf32> to vector<8x8xf32>
    %39 = vector.extract_strided_slice %37 {offsets = [0, 8], sizes = [8, 8], strides = [1, 1]} : vector<8x32xf32> to vector<8x8xf32>
    %40 = vector.extract_strided_slice %37 {offsets = [0, 16], sizes = [8, 8], strides = [1, 1]} : vector<8x32xf32> to vector<8x8xf32>
    %41 = vector.extract_strided_slice %37 {offsets = [0, 24], sizes = [8, 8], strides = [1, 1]} : vector<8x32xf32> to vector<8x8xf32>
    %42 = vector.shape_cast %38 : vector<8x8xf32> to vector<1x8x8xf32>
    %43 = vector.shape_cast %39 : vector<8x8xf32> to vector<1x8x8xf32>
    %44 = vector.shape_cast %40 : vector<8x8xf32> to vector<1x8x8xf32>
    %45 = vector.shape_cast %41 : vector<8x8xf32> to vector<1x8x8xf32>
    %46 = tpu.concatenate %42, %43, %44, %45 in 0 : vector<1x8x8xf32>, vector<1x8x8xf32>, vector<1x8x8xf32>, vector<1x8x8xf32> -> vector<4x8x8xf32>
    %47 = arith.truncf %46 : vector<4x8x8xf32> to vector<4x8x8xbf16>
    %c0_16 = arith.constant 0 : index
    %c0_17 = arith.constant 0 : index
    %c0_18 = arith.constant 0 : index
    %48 = vector.load %arg3[%c0_16, %c0_17, %c0_18] : memref<1x1x16xf32, #tpu.memory_space<vmem>>, vector<1x1x16xf32>
    %49 = vector.shape_cast %48 : vector<1x1x16xf32> to vector<1x16xf32>
    %c0_19 = arith.constant 0 : index
    %c0_20 = arith.constant 0 : index
    %c0_21 = arith.constant 0 : index
    %50 = vector.load %arg19[%c0_19, %c0_20, %c0_21] : memref<4x16x8xbf16, #tpu.memory_space<vmem>>, vector<4x16x8xbf16>
    "tpu.trace_start"() <{level = 10 : i32, message = "hqd,hkd->hqk"}> : () -> ()
    %cst_22 = arith.constant dense<0.000000e+00> : vector<4x8x16xf32>
    %51 = tpu.matmul %47, %50, %cst_22 {dimension_numbers = #tpu.dot_dimension_numbers<[2], [2], [1], [1], [0, 0, 0, 1, 1, 1], [0], [0]>} : vector<4x8x8xbf16>, vector<4x16x8xbf16>, vector<4x8x16xf32> -> vector<4x8x16xf32>
    "tpu.trace_stop"() : () -> ()
    %52 = vector.shape_cast %49 : vector<1x16xf32> to vector<1x1x16xf32>
    %cst_23 = arith.constant 0.000000e+00 : f32
    %53 = vector.broadcast %cst_23 : f32 to vector<1x1x16xf32>
    %54 = arith.cmpf ogt, %52, %53 : vector<1x1x16xf32>
    %cst_24 = arith.constant -1.000000e+09 : f32
    %55 = vector.shape_cast %54 : vector<1x1x16xi1> to vector<1x1x16xi1>
    %56 = vector.broadcast %55 : vector<1x1x16xi1> to vector<4x8x16xi1>
    %57 = vector.broadcast %cst_24 : f32 to vector<4x8x16xf32>
    %58 = arith.select %56, %51, %57 : vector<4x8x16xi1>, vector<4x8x16xf32>
    %cst_25 = arith.constant dense<0xFF800000> : vector<4x8xf32>
    %59 = vector.multi_reduction <maximumf>, %58, %cst_25 [2] : vector<4x8x16xf32> to vector<4x8xf32>
    %60 = vector.shape_cast %59 : vector<4x8xf32> to vector<4x8x1xf32>
    %61 = vector.broadcast %60 : vector<4x8x1xf32> to vector<4x8x16xf32>
    %62 = arith.subf %58, %61 : vector<4x8x16xf32>
    %63 = math.exp %62 : vector<4x8x16xf32>
    %cst_26 = arith.constant dense<0.000000e+00> : vector<4x8xf32>
    %64 = vector.multi_reduction <add>, %63, %cst_26 [2] : vector<4x8x16xf32> to vector<4x8xf32>
    %65 = vector.shape_cast %64 : vector<4x8xf32> to vector<4x8x1xf32>
    %66 = tpu.reciprocal %65 {approx = true} : vector<4x8x1xf32> -> vector<4x8x1xf32>
    %67 = vector.broadcast %66 : vector<4x8x1xf32> to vector<4x8x16xf32>
    %68 = arith.mulf %63, %67 : vector<4x8x16xf32>
    %69 = arith.truncf %68 : vector<4x8x16xf32> to vector<4x8x16xbf16>
    %c0_27 = arith.constant 0 : index
    %c0_28 = arith.constant 0 : index
    %c0_29 = arith.constant 0 : index
    %70 = vector.load %arg20[%c0_27, %c0_28, %c0_29] : memref<4x16x8xbf16, #tpu.memory_space<vmem>>, vector<4x16x8xbf16>
    "tpu.trace_start"() <{level = 10 : i32, message = "hqk,hkd->hqd"}> : () -> ()
    %cst_30 = arith.constant dense<0.000000e+00> : vector<4x8x8xf32>
    %71 = tpu.matmul %69, %70, %cst_30 {dimension_numbers = #tpu.dot_dimension_numbers<[2], [1], [1], [2], [0, 0, 0, 1, 1, 2], [0], [0]>} : vector<4x8x16xbf16>, vector<4x16x8xbf16>, vector<4x8x8xf32> -> vector<4x8x8xf32>
    "tpu.trace_stop"() : () -> ()
    %72 = vector.extract_strided_slice %71 {offsets = [0, 0, 0], sizes = [1, 8, 8], strides = [1, 1, 1]} : vector<4x8x8xf32> to vector<1x8x8xf32>
    %73 = vector.shape_cast %72 : vector<1x8x8xf32> to vector<8x8xf32>
    %74 = vector.extract_strided_slice %71 {offsets = [1, 0, 0], sizes = [1, 8, 8], strides = [1, 1, 1]} : vector<4x8x8xf32> to vector<1x8x8xf32>
    %75 = vector.shape_cast %74 : vector<1x8x8xf32> to vector<8x8xf32>
    %76 = vector.extract_strided_slice %71 {offsets = [2, 0, 0], sizes = [1, 8, 8], strides = [1, 1, 1]} : vector<4x8x8xf32> to vector<1x8x8xf32>
    %77 = vector.shape_cast %76 : vector<1x8x8xf32> to vector<8x8xf32>
    %78 = vector.extract_strided_slice %71 {offsets = [3, 0, 0], sizes = [1, 8, 8], strides = [1, 1, 1]} : vector<4x8x8xf32> to vector<1x8x8xf32>
    %79 = vector.shape_cast %78 : vector<1x8x8xf32> to vector<8x8xf32>
    %80 = tpu.concatenate %73, %75, %77, %79 in 1 : vector<8x8xf32>, vector<8x8xf32>, vector<8x8xf32>, vector<8x8xf32> -> vector<8x32xf32>
    %81 = arith.truncf %80 : vector<8x32xf32> to vector<8x32xbf16>
    %c0_31 = arith.constant 0 : index
    %c0_32 = arith.constant 0 : index
    %82 = vector.load %arg10[%c0_31, %c0_32] : memref<32x32xbf16, #tpu.memory_space<vmem>>, vector<32x32xbf16>
    %cst_33 = arith.constant dense<0.000000e+00> : vector<8x32xf32>
    %83 = tpu.matmul %81, %82, %cst_33 {dimension_numbers = #tpu.dot_dimension_numbers<[1], [0], [0], [1], [0, 0, 1, 1], [], []>} : vector<8x32xbf16>, vector<32x32xbf16>, vector<8x32xf32> -> vector<8x32xf32>
    %c0_34 = arith.constant 0 : index
    %c0_35 = arith.constant 0 : index
    %84 = vector.load %arg11[%c0_34, %c0_35] : memref<1x32xf32, #tpu.memory_space<vmem>>, vector<1x32xf32>
    %85 = vector.broadcast %84 : vector<1x32xf32> to vector<8x32xf32>
    %86 = arith.addf %83, %85 : vector<8x32xf32>
    %87 = arith.addf %9, %86 : vector<8x32xf32>
    %c0_36 = arith.constant 0 : index
    %c0_37 = arith.constant 0 : index
    %88 = vector.load %arg12[%c0_36, %c0_37] : memref<1x32xf32, #tpu.memory_space<vmem>>, vector<1x32xf32>
    %c0_38 = arith.constant 0 : index
    %c0_39 = arith.constant 0 : index
    %89 = vector.load %arg13[%c0_38, %c0_39] : memref<1x32xf32, #tpu.memory_space<vmem>>, vector<1x32xf32>
    %cst_40 = arith.constant dense<0.000000e+00> : vector<8xf32>
    %90 = vector.multi_reduction <add>, %87, %cst_40 [1] : vector<8x32xf32> to vector<8xf32>
    %91 = vector.shape_cast %90 : vector<8xf32> to vector<8x1xf32>
    %cst_41 = arith.constant 3.200000e+01 : f32
    %92 = vector.broadcast %cst_41 : f32 to vector<8x1xf32>
    %93 = arith.divf %91, %92 : vector<8x1xf32>
    %94 = vector.broadcast %93 : vector<8x1xf32> to vector<8x32xf32>
    %95 = arith.subf %87, %94 : vector<8x32xf32>
    %96 = arith.mulf %95, %95 : vector<8x32xf32>
    %cst_42 = arith.constant dense<0.000000e+00> : vector<8xf32>
    %97 = vector.multi_reduction <add>, %96, %cst_42 [1] : vector<8x32xf32> to vector<8xf32>
    %98 = vector.shape_cast %97 : vector<8xf32> to vector<8x1xf32>
    %cst_43 = arith.constant 3.100000e+01 : f32
    %99 = vector.broadcast %cst_43 : f32 to vector<8x1xf32>
    %100 = arith.divf %98, %99 : vector<8x1xf32>
    %101 = math.sqrt %100 : vector<8x1xf32>
    %cst_44 = arith.constant 9.99999997E-7 : f32
    %102 = vector.broadcast %cst_44 : f32 to vector<8x1xf32>
    %103 = arith.addf %101, %102 : vector<8x1xf32>
    %cst_45 = arith.constant 1.000000e+00 : f32
    %104 = vector.broadcast %cst_45 : f32 to vector<8x1xf32>
    %105 = arith.divf %104, %103 : vector<8x1xf32>
    %106 = vector.broadcast %88 : vector<1x32xf32> to vector<8x32xf32>
    %107 = arith.mulf %106, %95 : vector<8x32xf32>
    %108 = vector.broadcast %105 : vector<8x1xf32> to vector<8x32xf32>
    %109 = arith.mulf %107, %108 : vector<8x32xf32>
    %110 = vector.broadcast %89 : vector<1x32xf32> to vector<8x32xf32>
    %111 = arith.addf %109, %110 : vector<8x32xf32>
    %112 = arith.truncf %111 : vector<8x32xf32> to vector<8x32xbf16>
    %c0_46 = arith.constant 0 : index
    %c0_47 = arith.constant 0 : index
    %113 = vector.load %arg14[%c0_46, %c0_47] : memref<32x64xbf16, #tpu.memory_space<vmem>>, vector<32x64xbf16>
    %cst_48 = arith.constant dense<0.000000e+00> : vector<8x64xf32>
    %114 = tpu.matmul %112, %113, %cst_48 {dimension_numbers = #tpu.dot_dimension_numbers<[1], [0], [0], [1], [0, 0, 1, 1], [], []>} : vector<8x32xbf16>, vector<32x64xbf16>, vector<8x64xf32> -> vector<8x64xf32>
    %c0_49 = arith.constant 0 : index
    %c0_50 = arith.constant 0 : index
    %115 = vector.load %arg15[%c0_49, %c0_50] : memref<1x64xf32, #tpu.memory_space<vmem>>, vector<1x64xf32>
    %116 = vector.broadcast %115 : vector<1x64xf32> to vector<8x64xf32>
    %117 = arith.addf %114, %116 : vector<8x64xf32>
    %cst_51 = arith.constant 0.000000e+00 : f32
    %118 = vector.broadcast %cst_51 : f32 to vector<8x64xf32>
    %119 = arith.maximumf %117, %118 : vector<8x64xf32>
    %120 = arith.truncf %119 : vector<8x64xf32> to vector<8x64xbf16>
    %c0_52 = arith.constant 0 : index
    %c0_53 = arith.constant 0 : index
    %121 = vector.load %arg16[%c0_52, %c0_53] : memref<64x32xbf16, #tpu.memory_space<vmem>>, vector<64x32xbf16>
    %cst_54 = arith.constant dense<0.000000e+00> : vector<8x32xf32>
    %122 = tpu.matmul %120, %121, %cst_54 {dimension_numbers = #tpu.dot_dimension_numbers<[1], [0], [0], [1], [0, 0, 1, 1], [], []>} : vector<8x64xbf16>, vector<64x32xbf16>, vector<8x32xf32> -> vector<8x32xf32>
    %c0_55 = arith.constant 0 : index
    %c0_56 = arith.constant 0 : index
    %123 = vector.load %arg17[%c0_55, %c0_56] : memref<1x32xf32, #tpu.memory_space<vmem>>, vector<1x32xf32>
    %124 = vector.broadcast %123 : vector<1x32xf32> to vector<8x32xf32>
    %125 = arith.addf %122, %124 : vector<8x32xf32>
    %126 = arith.addf %87, %125 : vector<8x32xf32>
    %c0_57 = arith.constant 0 : index
    %c0_58 = arith.constant 0 : index
    %c0_59 = arith.constant 0 : index
    %127 = vector.load %arg18[%c0_57, %c0_58, %c0_59] : memref<1x8x32xf32, #tpu.memory_space<vmem>>, vector<1x8x32xf32>
    %128 = vector.shape_cast %127 : vector<1x8x32xf32> to vector<8x32xf32>
    %129 = vector.shape_cast %126 : vector<8x32xf32> to vector<1x8x32xf32>
    tpu.vector_store %arg18[%c0_57, %c0_58, %c0_59], %129 {strides = array<i32>} : memref<1x8x32xf32, #tpu.memory_space<vmem>>, vector<1x8x32xf32>,
    return
  }
  func.func @transform_0(%arg0: i32, %arg1: i32) -> (i32, i32, i32) {
    %c0_i32 = arith.constant 0 : i32
    %c0_i32_0 = arith.constant 0 : i32
    %c0_i32_1 = arith.constant 0 : i32
    return %arg0, %c0_i32, %c0_i32_0 : i32, i32, i32
  }
  func.func @transform_1(%arg0: i32, %arg1: i32) -> (i32, i32, i32) {
    %c0_i32 = arith.constant 0 : i32
    %c0_i32_0 = arith.constant 0 : i32
    %c0_i32_1 = arith.constant 0 : i32
    return %arg0, %c0_i32, %c0_i32_0 : i32, i32, i32
  }
  func.func @transform_2(%arg0: i32, %arg1: i32) -> (i32, i32) {
    %c0_i32 = arith.constant 0 : i32
    %c0_i32_0 = arith.constant 0 : i32
    %c0_i32_1 = arith.constant 0 : i32
    return %c0_i32, %c0_i32_0 : i32, i32
  }
  func.func @transform_3(%arg0: i32, %arg1: i32) -> (i32, i32) {
    %c0_i32 = arith.constant 0 : i32
    %c0_i32_0 = arith.constant 0 : i32
    %c0_i32_1 = arith.constant 0 : i32
    return %c0_i32, %c0_i32_0 : i32, i32
  }
  func.func @transform_4(%arg0: i32, %arg1: i32) -> (i32, i32) {
    %c0_i32 = arith.constant 0 : i32
    %c0_i32_0 = arith.constant 0 : i32
    %c0_i32_1 = arith.constant 0 : i32
    return %c0_i32, %c0_i32_0 : i32, i32
  }
  func.func @transform_5(%arg0: i32, %arg1: i32) -> (i32, i32) {
    %c0_i32 = arith.constant 0 : i32
    %c0_i32_0 = arith.constant 0 : i32
    %c0_i32_1 = arith.constant 0 : i32
    return %c0_i32, %c0_i32_0 : i32, i32
  }
  func.func @transform_6(%arg0: i32, %arg1: i32) -> (i32, i32) {
    %c0_i32 = arith.constant 0 : i32
    %c0_i32_0 = arith.constant 0 : i32
    %c0_i32_1 = arith.constant 0 : i32
    return %c0_i32, %c0_i32_0 : i32, i32
  }
  func.func @transform_7(%arg0: i32, %arg1: i32) -> (i32, i32) {
    %c0_i32 = arith.constant 0 : i32
    %c0_i32_0 = arith.constant 0 : i32
    %c0_i32_1 = arith.constant 0 : i32
    return %c0_i32, %c0_i32_0 : i32, i32
  }
  func.func @transform_8(%arg0: i32, %arg1: i32) -> (i32, i32) {
    %c0_i32 = arith.constant 0 : i32
    %c0_i32_0 = arith.constant 0 : i32
    %c0_i32_1 = arith.constant 0 : i32
    return %c0_i32, %c0_i32_0 : i32, i32
  }
  func.func @transform_9(%arg0: i32, %arg1: i32) -> (i32, i32) {
    %c0_i32 = arith.constant 0 : i32
    %c0_i32_0 = arith.constant 0 : i32
    %c0_i32_1 = arith.constant 0 : i32
    return %c0_i32, %c0_i32_0 : i32, i32
  }
  func.func @transform_10(%arg0: i32, %arg1: i32) -> (i32, i32) {
    %c0_i32 = arith.constant 0 : i32
    %c0_i32_0 = arith.constant 0 : i32
    %c0_i32_1 = arith.constant 0 : i32
    return %c0_i32, %c0_i32_0 : i32, i32
  }
  func.func @transform_11(%arg0: i32, %arg1: i32) -> (i32, i32) {
    %c0_i32 = arith.constant 0 : i32
    %c0_i32_0 = arith.constant 0 : i32
    %c0_i32_1 = arith.constant 0 : i32
    return %c0_i32, %c0_i32_0 : i32, i32
  }
  func.func @transform_12(%arg0: i32, %arg1: i32) -> (i32, i32) {
    %c0_i32 = arith.constant 0 : i32
    %c0_i32_0 = arith.constant 0 : i32
    %c0_i32_1 = arith.constant 0 : i32
    return %c0_i32, %c0_i32_0 : i32, i32
  }
  func.func @transform_13(%arg0: i32, %arg1: i32) -> (i32, i32) {
    %c0_i32 = arith.constant 0 : i32
    %c0_i32_0 = arith.constant 0 : i32
    %c0_i32_1 = arith.constant 0 : i32
    return %c0_i32, %c0_i32_0 : i32, i32
  }
  func.func @transform_14(%arg0: i32, %arg1: i32) -> (i32, i32) {
    %c0_i32 = arith.constant 0 : i32
    %c0_i32_0 = arith.constant 0 : i32
    %c0_i32_1 = arith.constant 0 : i32
    return %c0_i32, %c0_i32_0 : i32, i32
  }
  func.func @transform_15(%arg0: i32, %arg1: i32) -> (i32, i32) {
    %c0_i32 = arith.constant 0 : i32
    %c0_i32_0 = arith.constant 0 : i32
    %c0_i32_1 = arith.constant 0 : i32
    return %c0_i32, %c0_i32_0 : i32, i32
  }
  func.func @transform_16(%arg0: i32, %arg1: i32) -> (i32, i32, i32) {
    %c0_i32 = arith.constant 0 : i32
    %c0_i32_0 = arith.constant 0 : i32
    return %arg0, %arg1, %c0_i32 : i32, i32, i32
  }
}

</mosaic_0001>

<llo_original>
// kernel: encoder_layer.1
$region0: #{encoder_layer.1}
  #allocation0 [shape = 'u32[]', space=smem, size = 0x4, offset = 0x4, fixed_abs, tag = 'smem constant byte address 0x4 - core index']
  #allocation1 [shape = 'u32[144,128]{1,0:T(1,128)}', space=vmem, size = 0x12000, scoped, tag = 'internal scratch']
  #allocation2 [shape = 'bf16[4,16,8]{2,1,0:T(16,128)(2,1)}', space=vmem, size = 0x4000, scoped, tag = 'scratch operand']
  #allocation3 [shape = 'bf16[4,16,8]{2,1,0:T(16,128)(2,1)}', space=vmem, size = 0x4000, scoped, tag = 'scratch operand']
  %s0 = inlined_call_operand.vmem [shape: f32[2,16,32], index: 0, kind: input, shape index: {}]
  %s1 = inlined_call_operand.hbm [shape: f32[2,1,16], index: 1, kind: input, shape index: {}]
  %s2 = inlined_call_operand.vmem [shape: f32[1,32], index: 2, kind: input, shape index: {}]
  %s3 = inlined_call_operand.hbm [shape: f32[1,32], index: 3, kind: input, shape index: {}]
  %s4 = inlined_call_operand.vmem [shape: bf16[32,32], index: 4, kind: input, shape index: {}]
  %s5 = inlined_call_operand.hbm [shape: f32[1,32], index: 5, kind: input, shape index: {}]
  %s6 = inlined_call_operand.vmem [shape: bf16[32,64], index: 6, kind: input, shape index: {}]
  %s7 = inlined_call_operand.hbm [shape: f32[1,64], index: 7, kind: input, shape index: {}]
  %s8 = inlined_call_operand.vmem [shape: bf16[32,32], index: 8, kind: input, shape index: {}]
  %s9 = inlined_call_operand.hbm [shape: f32[1,32], index: 9, kind: input, shape index: {}]
  %s10 = inlined_call_operand.hbm [shape: f32[1,32], index: 10, kind: input, shape index: {}]
  %s11 = inlined_call_operand.hbm [shape: f32[1,32], index: 11, kind: input, shape index: {}]
  %s12 = inlined_call_operand.hbm [shape: bf16[32,64], index: 12, kind: input, shape index: {}]
  %s13 = inlined_call_operand.hbm [shape: f32[1,64], index: 13, kind: input, shape index: {}]
  %s14 = inlined_call_operand.vmem [shape: bf16[64,32], index: 14, kind: input, shape index: {}]
  %s15 = inlined_call_operand.hbm [shape: f32[1,32], index: 15, kind: input, shape index: {}]
  %s16 = inlined_call_operand.hbm [shape: f32[2,16,32], index: 16, kind: output, shape index: {}]
  %s17 = sld [smem:[#allocation0]]
  $region141: #{encoder_layer.1} parent=0
    _
  %s19 = ssub.s32 1, %s17
  %s20 = scalar_select 0, %s19, %s17
  $region1: #{encoder_layer.1} parent=0
    #allocation4 [shape = 'u8[1024]{0}', space=vmem, size = 0x400, scoped, tag = 'input window, operand 1']
    #allocation5 [shape = 's32[2]{0}', space=sflag, size = 0x8, scoped, tag = 'scoped memory for encoder_layer.1']
    #allocation6 [shape = 's32[2]{0}', space=sflag, size = 0x8, scoped, tag = 'scoped memory for encoder_layer.1']
    #allocation7 [shape = 'u8[512]{0}', space=vmem, size = 0x400, scoped, tag = 'input window, operand 3, single buffered']
    #allocation8 [shape = 's32[1]{0}', space=sflag, size = 0x4, scoped, tag = 'scoped memory for encoder_layer.1']
    #allocation9 [shape = 'u8[512]{0}', space=vmem, size = 0x400, scoped, tag = 'input window, operand 5, single buffered']
    #allocation10 [shape = 'u8[512]{0}', space=vmem, size = 0x400, scoped, tag = 'input window, operand 7, single buffered']
    #allocation11 [shape = 's32[1]{0}', space=sflag, size = 0x4, scoped, tag = 'scoped memory for encoder_layer.1']
    #allocation12 [shape = 'u8[512]{0}', space=vmem, size = 0x400, scoped, tag = 'input window, operand 9, single buffered']
    #allocation13 [shape = 'u8[512]{0}', space=vmem, size = 0x400, scoped, tag = 'input window, operand 10, single buffered']
    #allocation14 [shape = 's32[1]{0}', space=sflag, size = 0x4, scoped, tag = 'scoped memory for encoder_layer.1']
    #allocation15 [shape = 'u8[512]{0}', space=vmem, size = 0x400, scoped, tag = 'input window, operand 11, single buffered']
    #allocation16 [shape = 'u8[8192]{0}', space=vmem, size = 0x2000, scoped, tag = 'input window, operand 12, single buffered']
    #allocation17 [shape = 's32[1]{0}', space=sflag, size = 0x4, scoped, tag = 'scoped memory for encoder_layer.1']
    #allocation18 [shape = 'u8[512]{0}', space=vmem, size = 0x400, scoped, tag = 'input window, operand 13, single buffered']
    #allocation19 [shape = 'u8[512]{0}', space=vmem, size = 0x400, scoped, tag = 'input window, operand 15, single buffered']
    #allocation20 [shape = 's32[1]{0}', space=sflag, size = 0x4, scoped, tag = 'scoped memory for encoder_layer.1']
    #allocation21 [shape = 'u8[8192]{0}', space=vmem, size = 0x2000, scoped, tag = 'output window, operand 0']
    %21 = vsyncpa [#allocation5], 0
    %s22 = scalar_lea.sflag [#allocation5], 1
    %23 = vsyncpa %s22, 0
    %24 = vsyncpa [#allocation8], 0
    %25 = vsyncpa [#allocation11], 0
    %26 = vsyncpa [#allocation14], 0
    %27 = vsyncpa [#allocation17], 0
    %28 = vsyncpa [#allocation20], 0
    %29 = vsyncpa [#allocation6], 0
    %s30 = scalar_lea.sflag [#allocation6], 1
    %31 = vsyncpa %s30, 0
    loop: start=0, step=1, limit=6
    $region2: #{encoder_layer.1} parent=1 // loop_pre_header
      _
    $region3: #{encoder_layer.1} parent=1 // loop_header
      %s33 = sphi 0, %s37
      %p34 = scmp.ge.s32.totalorder %s33, 6
      %s40 = sphi 0, %s52
      %s41 = sphi 0, %s48
      %s42 = sphi 0, %s40
      %s43 = sphi 0, %s41
      %s44 = sphi 0, %s42
      %s45 = sphi 0, %s43
      %s55 = sphi 0, %s57
      %s58 = sphi 0, %s55
      %s59 = sphi 0, %s58
      %s75 = sphi 0, %s59
      %s81 = sphi 0, %s83
      %s84 = sphi 0, %s81
      %s85 = sphi 0, %s84
      %s101 = sphi 0, %s85
      %s105 = sphi 0, %s105
      %s107 = sphi 0, %s105
      %s108 = sphi 0, %s107
      %s122 = sphi 0, %s108
      %s126 = sphi 0, %s126
      %s128 = sphi 0, %s126
      %s129 = sphi 0, %s128
      %s143 = sphi 0, %s129
      %s147 = sphi 0, %s147
      %s149 = sphi 0, %s147
      %s150 = sphi 0, %s149
      %s164 = sphi 0, %s150
      %s168 = sphi 0, %s168
      %s170 = sphi 0, %s168
      %s171 = sphi 0, %s170
      %s185 = sphi 0, %s171
      %s189 = sphi 0, %s189
      %s191 = sphi 0, %s189
      %s192 = sphi 0, %s191
      %s206 = sphi 0, %s192
      %s210 = sphi 0, %s210
      %s212 = sphi 0, %s210
      %s213 = sphi 0, %s212
      %s227 = sphi 0, %s213
      %s231 = sphi 0, %s231
      %s233 = sphi 0, %s231
      %s234 = sphi 0, %s233
      %s248 = sphi 0, %s234
      %s252 = sphi 0, %s252
      %s254 = sphi 0, %s252
      %s255 = sphi 0, %s254
      %s269 = sphi 0, %s255
      %s273 = sphi 0, %s273
      %s275 = sphi 0, %s273
      %s276 = sphi 0, %s275
      %s290 = sphi 0, %s276
      %s294 = sphi 0, %s294
      %s296 = sphi 0, %s294
      %s297 = sphi 0, %s296
      %s311 = sphi 0, %s297
      %s315 = sphi 0, %s315
      %s317 = sphi 0, %s315
      %s318 = sphi 0, %s317
      %s332 = sphi 0, %s318
      %s336 = sphi 0, %s336
      %s338 = sphi 0, %s336
      %s339 = sphi 0, %s338
      %s353 = sphi 0, %s339
      %s357 = sphi 0, %s357
      %s359 = sphi 0, %s357
      %s360 = sphi 0, %s359
      %s374 = sphi 0, %s360
      %s378 = sphi 0, %s378
      %s380 = sphi 0, %s378
      %s381 = sphi 0, %s380
      %s395 = sphi 0, %s381
      %s403 = sphi 0, %s405
      %s406 = sphi 0, %s403
      %s407 = sphi 0, %s406
      %s423 = sphi 0, %s407
    $region4: #{encoder_layer.1} parent=1 // loop_header_branch
      %36 = sbr.rel (%p34) target = $region8
    $region5: #{encoder_layer.1} parent=1 // loop_body
      %s38 = ssub.s32 %s33, 1
      %s39 = ssub.s32 %s33, 2
      %s46 = sadd.s32 1, %s41
      %p47 = scmp.ge.s32.totalorder %s46, 2
      %s48 = scalar_select %p47, 0, %s46
      %s49 = sadd.s32 1, %s40
      %s50 = scalar_select %p47, %s49, %s40
      %p51 = scmp.ge.s32.totalorder %s50, 2
      %s52 = scalar_select %p51, 0, %s50
      %s53 = ssub.s32 %s40, %s52
      %p54 = scmp.eq.s32.totalorder %s53, 0
      %s56 = sadd.s32 %s55, 1
      %s57 = scalar_select %p54, %s55, %s56
      %p60 = pneg %p54
      %p61 = scmp.eq.s32.totalorder %s33, 3
      %p62 = por %p60, %p61
      %p63 = scmp.ne.s32.totalorder %s55, %s58
      %p64 = scmp.eq.s32.totalorder %s33, 0
      %p65 = por %p63, %p64
      %p66 = scmp.ne.s32.totalorder %s55, %s58
      %p67 = scmp.eq.s32.totalorder %s38, 3
      %p68 = por %p66, %p67
      %p69 = scmp.ne.s32.totalorder %s58, %s59
      %p70 = scmp.eq.s32.totalorder %s38, 0
      %p71 = por %p69, %p70
      %p72 = scmp.ne.s32.totalorder %s58, %s59
      %p73 = scmp.eq.s32.totalorder %s39, 3
      %p74 = por %p72, %p73
      %p76 = scmp.ne.s32.totalorder %s59, %s75
      %p77 = scmp.eq.s32.totalorder %s39, 0
      %p78 = por %p76, %p77
      %s79 = ssub.s32 %s40, %s52
      %p80 = scmp.eq.s32.totalorder %s79, 0
      %s82 = sadd.s32 %s81, 1
      %s83 = scalar_select %p80, %s81, %s82
      %p86 = pneg %p80
      %p87 = scmp.eq.s32.totalorder %s33, 3
      %p88 = por %p86, %p87
      %p89 = scmp.ne.s32.totalorder %s81, %s84
      %p90 = scmp.eq.s32.totalorder %s33, 0
      %p91 = por %p89, %p90
      %p92 = scmp.ne.s32.totalorder %s81, %s84
      %p93 = scmp.eq.s32.totalorder %s38, 3
      %p94 = por %p92, %p93
      %p95 = scmp.ne.s32.totalorder %s84, %s85
      %p96 = scmp.eq.s32.totalorder %s38, 0
      %p97 = por %p95, %p96
      %p98 = scmp.ne.s32.totalorder %s84, %s85
      %p99 = scmp.eq.s32.totalorder %s39, 3
      %p100 = por %p98, %p99
      %p102 = scmp.ne.s32.totalorder %s85, %s101
      %p103 = scmp.eq.s32.totalorder %s39, 0
      %p104 = por %p102, %p103
      %s106 = sadd.s32 %s105, 1
      %p109 = scmp.eq.s32.totalorder %s33, 3
      %p110 = scmp.ne.s32.totalorder %s105, %s107
      %p111 = scmp.eq.s32.totalorder %s33, 0
      %p112 = por %p110, %p111
      %p113 = scmp.ne.s32.totalorder %s105, %s107
      %p114 = scmp.eq.s32.totalorder %s38, 3
      %p115 = por %p113, %p114
      %p116 = scmp.ne.s32.totalorder %s107, %s108
      %p117 = scmp.eq.s32.totalorder %s38, 0
      %p118 = por %p116, %p117
      %p119 = scmp.ne.s32.totalorder %s107, %s108
      %p120 = scmp.eq.s32.totalorder %s39, 3
      %p121 = por %p119, %p120
      %p123 = scmp.ne.s32.totalorder %s108, %s122
      %p124 = scmp.eq.s32.totalorder %s39, 0
      %p125 = por %p123, %p124
      %s127 = sadd.s32 %s126, 1
      %p130 = scmp.eq.s32.totalorder %s33, 3
      %p131 = scmp.ne.s32.totalorder %s126, %s128
      %p132 = scmp.eq.s32.totalorder %s33, 0
      %p133 = por %p131, %p132
      %p134 = scmp.ne.s32.totalorder %s126, %s128
      %p135 = scmp.eq.s32.totalorder %s38, 3
      %p136 = por %p134, %p135
      %p137 = scmp.ne.s32.totalorder %s128, %s129
      %p138 = scmp.eq.s32.totalorder %s38, 0
      %p139 = por %p137, %p138
      %p140 = scmp.ne.s32.totalorder %s128, %s129
      %p141 = scmp.eq.s32.totalorder %s39, 3
      %p142 = por %p140, %p141
      %p144 = scmp.ne.s32.totalorder %s129, %s143
      %p145 = scmp.eq.s32.totalorder %s39, 0
      %p146 = por %p144, %p145
      %s148 = sadd.s32 %s147, 1
      %p151 = scmp.eq.s32.totalorder %s33, 3
      %p152 = scmp.ne.s32.totalorder %s147, %s149
      %p153 = scmp.eq.s32.totalorder %s33, 0
      %p154 = por %p152, %p153
      %p155 = scmp.ne.s32.totalorder %s147, %s149
      %p156 = scmp.eq.s32.totalorder %s38, 3
      %p157 = por %p155, %p156
      %p158 = scmp.ne.s32.totalorder %s149, %s150
      %p159 = scmp.eq.s32.totalorder %s38, 0
      %p160 = por %p158, %p159
      %p161 = scmp.ne.s32.totalorder %s149, %s150
      %p162 = scmp.eq.s32.totalorder %s39, 3
      %p163 = por %p161, %p162
      %p165 = scmp.ne.s32.totalorder %s150, %s164
      %p166 = scmp.eq.s32.totalorder %s39, 0
      %p167 = por %p165, %p166
      %s169 = sadd.s32 %s168, 1
      %p172 = scmp.eq.s32.totalorder %s33, 3
      %p173 = scmp.ne.s32.totalorder %s168, %s170
      %p174 = scmp.eq.s32.totalorder %s33, 0
      %p175 = por %p173, %p174
      %p176 = scmp.ne.s32.totalorder %s168, %s170
      %p177 = scmp.eq.s32.totalorder %s38, 3
      %p178 = por %p176, %p177
      %p179 = scmp.ne.s32.totalorder %s170, %s171
      %p180 = scmp.eq.s32.totalorder %s38, 0
      %p181 = por %p179, %p180
      %p182 = scmp.ne.s32.totalorder %s170, %s171
      %p183 = scmp.eq.s32.totalorder %s39, 3
      %p184 = por %p182, %p183
      %p186 = scmp.ne.s32.totalorder %s171, %s185
      %p187 = scmp.eq.s32.totalorder %s39, 0
      %p188 = por %p186, %p187
      %s190 = sadd.s32 %s189, 1
      %p193 = scmp.eq.s32.totalorder %s33, 3
      %p194 = scmp.ne.s32.totalorder %s189, %s191
      %p195 = scmp.eq.s32.totalorder %s33, 0
      %p196 = por %p194, %p195
      %p197 = scmp.ne.s32.totalorder %s189, %s191
      %p198 = scmp.eq.s32.totalorder %s38, 3
      %p199 = por %p197, %p198
      %p200 = scmp.ne.s32.totalorder %s191, %s192
      %p201 = scmp.eq.s32.totalorder %s38, 0
      %p202 = por %p200, %p201
      %p203 = scmp.ne.s32.totalorder %s191, %s192
      %p204 = scmp.eq.s32.totalorder %s39, 3
      %p205 = por %p203, %p204
      %p207 = scmp.ne.s32.totalorder %s192, %s206
      %p208 = scmp.eq.s32.totalorder %s39, 0
      %p209 = por %p207, %p208
      %s211 = sadd.s32 %s210, 1
      %p214 = scmp.eq.s32.totalorder %s33, 3
      %p215 = scmp.ne.s32.totalorder %s210, %s212
      %p216 = scmp.eq.s32.totalorder %s33, 0
      %p217 = por %p215, %p216
      %p218 = scmp.ne.s32.totalorder %s210, %s212
      %p219 = scmp.eq.s32.totalorder %s38, 3
      %p220 = por %p218, %p219
      %p221 = scmp.ne.s32.totalorder %s212, %s213
      %p222 = scmp.eq.s32.totalorder %s38, 0
      %p223 = por %p221, %p222
      %p224 = scmp.ne.s32.totalorder %s212, %s213
      %p225 = scmp.eq.s32.totalorder %s39, 3
      %p226 = por %p224, %p225
      %p228 = scmp.ne.s32.totalorder %s213, %s227
      %p229 = scmp.eq.s32.totalorder %s39, 0
      %p230 = por %p228, %p229
      %s232 = sadd.s32 %s231, 1
      %p235 = scmp.eq.s32.totalorder %s33, 3
      %p236 = scmp.ne.s32.totalorder %s231, %s233
      %p237 = scmp.eq.s32.totalorder %s33, 0
      %p238 = por %p236, %p237
      %p239 = scmp.ne.s32.totalorder %s231, %s233
      %p240 = scmp.eq.s32.totalorder %s38, 3
      %p241 = por %p239, %p240
      %p242 = scmp.ne.s32.totalorder %s233, %s234
      %p243 = scmp.eq.s32.totalorder %s38, 0
      %p244 = por %p242, %p243
      %p245 = scmp.ne.s32.totalorder %s233, %s234
      %p246 = scmp.eq.s32.totalorder %s39, 3
      %p247 = por %p245, %p246
      %p249 = scmp.ne.s32.totalorder %s234, %s248
      %p250 = scmp.eq.s32.totalorder %s39, 0
      %p251 = por %p249, %p250
      %s253 = sadd.s32 %s252, 1
      %p256 = scmp.eq.s32.totalorder %s33, 3
      %p257 = scmp.ne.s32.totalorder %s252, %s254
      %p258 = scmp.eq.s32.totalorder %s33, 0
      %p259 = por %p257, %p258
      %p260 = scmp.ne.s32.totalorder %s252, %s254
      %p261 = scmp.eq.s32.totalorder %s38, 3
      %p262 = por %p260, %p261
      %p263 = scmp.ne.s32.totalorder %s254, %s255
      %p264 = scmp.eq.s32.totalorder %s38, 0
      %p265 = por %p263, %p264
      %p266 = scmp.ne.s32.totalorder %s254, %s255
      %p267 = scmp.eq.s32.totalorder %s39, 3
      %p268 = por %p266, %p267
      %p270 = scmp.ne.s32.totalorder %s255, %s269
      %p271 = scmp.eq.s32.totalorder %s39, 0
      %p272 = por %p270, %p271
      %s274 = sadd.s32 %s273, 1
      %p277 = scmp.eq.s32.totalorder %s33, 3
      %p278 = scmp.ne.s32.totalorder %s273, %s275
      %p279 = scmp.eq.s32.totalorder %s33, 0
      %p280 = por %p278, %p279
      %p281 = scmp.ne.s32.totalorder %s273, %s275
      %p282 = scmp.eq.s32.totalorder %s38, 3
      %p283 = por %p281, %p282
      %p284 = scmp.ne.s32.totalorder %s275, %s276
      %p285 = scmp.eq.s32.totalorder %s38, 0
      %p286 = por %p284, %p285
      %p287 = scmp.ne.s32.totalorder %s275, %s276
      %p288 = scmp.eq.s32.totalorder %s39, 3
      %p289 = por %p287, %p288
      %p291 = scmp.ne.s32.totalorder %s276, %s290
      %p292 = scmp.eq.s32.totalorder %s39, 0
      %p293 = por %p291, %p292
      %s295 = sadd.s32 %s294, 1
      %p298 = scmp.eq.s32.totalorder %s33, 3
      %p299 = scmp.ne.s32.totalorder %s294, %s296
      %p300 = scmp.eq.s32.totalorder %s33, 0
      %p301 = por %p299, %p300
      %p302 = scmp.ne.s32.totalorder %s294, %s296
      %p303 = scmp.eq.s32.totalorder %s38, 3
      %p304 = por %p302, %p303
      %p305 = scmp.ne.s32.totalorder %s296, %s297
      %p306 = scmp.eq.s32.totalorder %s38, 0
      %p307 = por %p305, %p306
      %p308 = scmp.ne.s32.totalorder %s296, %s297
      %p309 = scmp.eq.s32.totalorder %s39, 3
      %p310 = por %p308, %p309
      %p312 = scmp.ne.s32.totalorder %s297, %s311
      %p313 = scmp.eq.s32.totalorder %s39, 0
      %p314 = por %p312, %p313
      %s316 = sadd.s32 %s315, 1
      %p319 = scmp.eq.s32.totalorder %s33, 3
      %p320 = scmp.ne.s32.totalorder %s315, %s317
      %p321 = scmp.eq.s32.totalorder %s33, 0
      %p322 = por %p320, %p321
      %p323 = scmp.ne.s32.totalorder %s315, %s317
      %p324 = scmp.eq.s32.totalorder %s38, 3
      %p325 = por %p323, %p324
      %p326 = scmp.ne.s32.totalorder %s317, %s318
      %p327 = scmp.eq.s32.totalorder %s38, 0
      %p328 = por %p326, %p327
      %p329 = scmp.ne.s32.totalorder %s317, %s318
      %p330 = scmp.eq.s32.totalorder %s39, 3
      %p331 = por %p329, %p330
      %p333 = scmp.ne.s32.totalorder %s318, %s332
      %p334 = scmp.eq.s32.totalorder %s39, 0
      %p335 = por %p333, %p334
      %s337 = sadd.s32 %s336, 1
      %p340 = scmp.eq.s32.totalorder %s33, 3
      %p341 = scmp.ne.s32.totalorder %s336, %s338
      %p342 = scmp.eq.s32.totalorder %s33, 0
      %p343 = por %p341, %p342
      %p344 = scmp.ne.s32.totalorder %s336, %s338
      %p345 = scmp.eq.s32.totalorder %s38, 3
      %p346 = por %p344, %p345
      %p347 = scmp.ne.s32.totalorder %s338, %s339
      %p348 = scmp.eq.s32.totalorder %s38, 0
      %p349 = por %p347, %p348
      %p350 = scmp.ne.s32.totalorder %s338, %s339
      %p351 = scmp.eq.s32.totalorder %s39, 3
      %p352 = por %p350, %p351
      %p354 = scmp.ne.s32.totalorder %s339, %s353
      %p355 = scmp.eq.s32.totalorder %s39, 0
      %p356 = por %p354, %p355
      %s358 = sadd.s32 %s357, 1
      %p361 = scmp.eq.s32.totalorder %s33, 3
      %p362 = scmp.ne.s32.totalorder %s357, %s359
      %p363 = scmp.eq.s32.totalorder %s33, 0
      %p364 = por %p362, %p363
      %p365 = scmp.ne.s32.totalorder %s357, %s359
      %p366 = scmp.eq.s32.totalorder %s38, 3
      %p367 = por %p365, %p366
      %p368 = scmp.ne.s32.totalorder %s359, %s360
      %p369 = scmp.eq.s32.totalorder %s38, 0
      %p370 = por %p368, %p369
      %p371 = scmp.ne.s32.totalorder %s359, %s360
      %p372 = scmp.eq.s32.totalorder %s39, 3
      %p373 = por %p371, %p372
      %p375 = scmp.ne.s32.totalorder %s360, %s374
      %p376 = scmp.eq.s32.totalorder %s39, 0
      %p377 = por %p375, %p376
      %s379 = sadd.s32 %s378, 1
      %p382 = scmp.eq.s32.totalorder %s33, 3
      %p383 = scmp.ne.s32.totalorder %s378, %s380
      %p384 = scmp.eq.s32.totalorder %s33, 0
      %p385 = por %p383, %p384
      %p386 = scmp.ne.s32.totalorder %s378, %s380
      %p387 = scmp.eq.s32.totalorder %s38, 3
      %p388 = por %p386, %p387
      %p389 = scmp.ne.s32.totalorder %s380, %s381
      %p390 = scmp.eq.s32.totalorder %s38, 0
      %p391 = por %p389, %p390
      %p392 = scmp.ne.s32.totalorder %s380, %s381
      %p393 = scmp.eq.s32.totalorder %s39, 3
      %p394 = por %p392, %p393
      %p396 = scmp.ne.s32.totalorder %s381, %s395
      %p397 = scmp.eq.s32.totalorder %s39, 0
      %p398 = por %p396, %p397
      %s399 = ssub.s32 %s40, %s52
      %s400 = ssub.s32 %s41, %s48
      %s401 = sor.u32 %s399, %s400
      %p402 = scmp.eq.s32.totalorder %s401, 0
      %s404 = sadd.s32 %s403, 1
      %s405 = scalar_select %p402, %s403, %s404
      %p408 = pneg %p402
      %p409 = scmp.eq.s32.totalorder %s33, 3
      %p410 = por %p408, %p409
      %p411 = scmp.ne.s32.totalorder %s403, %s406
      %p412 = scmp.eq.s32.totalorder %s33, 0
      %p413 = por %p411, %p412
      %p414 = scmp.ne.s32.totalorder %s403, %s406
      %p415 = scmp.eq.s32.totalorder %s38, 3
      %p416 = por %p414, %p415
      %p417 = scmp.ne.s32.totalorder %s406, %s407
      %p418 = scmp.eq.s32.totalorder %s38, 0
      %p419 = por %p417, %p418
      %p420 = scmp.ne.s32.totalorder %s406, %s407
      %p421 = scmp.eq.s32.totalorder %s39, 3
      %p422 = por %p420, %p421
      %p424 = scmp.ne.s32.totalorder %s407, %s423
      %p425 = scmp.eq.s32.totalorder %s39, 0
      %p426 = por %p424, %p425
      %p427 = scmp.le.s32.totalorder 1, %s33
      %p428 = scmp.lt.s32.totalorder %s33, 5
      %p429 = pnand %p427, %p428
      %p430 = pneg %p429
      // Predicated region
      $region9: #{encoder_layer.1} parent=5 // pred_check
        _
      $region10: #{encoder_layer.1} parent=5 // pred_check_branch
        %432 = sbr.rel (%p429) target = $region12
      $region11: #{encoder_layer.1} parent=5 // pred_region
        %s433 = ssub.s32 %s33, 1
        // Predicated region
        $region13: #{encoder_layer.1} parent=11 // pred_check
          %p434 = pneg %p118
        $region14: #{encoder_layer.1} parent=11 // pred_check_branch
          %436 = sbr.rel (%p434) target = $region16
        $region15: #{encoder_layer.1} parent=11 // pred_region
          _
        $region16: #{encoder_layer.1} parent=11 // pred_fallthru
          _
        // Predicated region
        $region17: #{encoder_layer.1} parent=11 // pred_check
          %p437 = pneg %p139
        $region18: #{encoder_layer.1} parent=11 // pred_check_branch
          %439 = sbr.rel (%p437) target = $region20
        $region19: #{encoder_layer.1} parent=11 // pred_region
          %s441 = ssub.s32 16, 16
          %442 = vsyncadd [#allocation8], %s441
          %s444 = sshll.u32 [#allocation7], 4
          %s445 = int_to_ptr.vmem [resolvable:$true] %s444
          %447 = dma.hbm_to_vmem [thread:$0]  %s3, 16, %s445, [#allocation8]
        $region20: #{encoder_layer.1} parent=11 // pred_fallthru
          _
        // Predicated region
        $region21: #{encoder_layer.1} parent=11 // pred_check
          %p448 = pneg %p160
        $region22: #{encoder_layer.1} parent=11 // pred_check_branch
          %450 = sbr.rel (%p448) target = $region24
        $region23: #{encoder_layer.1} parent=11 // pred_region
          _
        $region24: #{encoder_layer.1} parent=11 // pred_fallthru
          _
        // Predicated region
        $region25: #{encoder_layer.1} parent=11 // pred_check
          %p451 = pneg %p181
        $region26: #{encoder_layer.1} parent=11 // pred_check_branch
          %453 = sbr.rel (%p451) target = $region28
        $region27: #{encoder_layer.1} parent=11 // pred_region
          %s455 = ssub.s32 16, 16
          %456 = vsyncadd [#allocation8], %s455
          %s458 = sshll.u32 [#allocation9], 4
          %s459 = int_to_ptr.vmem [resolvable:$true] %s458
          %461 = dma.hbm_to_vmem [thread:$0]  %s5, 16, %s459, [#allocation8]
        $region28: #{encoder_layer.1} parent=11 // pred_fallthru
          _
        // Predicated region
        $region29: #{encoder_layer.1} parent=11 // pred_check
          %p462 = pneg %p202
        $region30: #{encoder_layer.1} parent=11 // pred_check_branch
          %464 = sbr.rel (%p462) target = $region32
        $region31: #{encoder_layer.1} parent=11 // pred_region
          _
        $region32: #{encoder_layer.1} parent=11 // pred_fallthru
          _
        // Predicated region
        $region33: #{encoder_layer.1} parent=11 // pred_check
          %p465 = pneg %p223
        $region34: #{encoder_layer.1} parent=11 // pred_check_branch
          %467 = sbr.rel (%p465) target = $region36
        $region35: #{encoder_layer.1} parent=11 // pred_region
          %s469 = ssub.s32 16, 16
          %470 = vsyncadd [#allocation11], %s469
          %s472 = sshll.u32 [#allocation10], 4
          %s473 = int_to_ptr.vmem [resolvable:$true] %s472
          %475 = dma.hbm_to_vmem [thread:$0]  %s7, 16, %s473, [#allocation11]
        $region36: #{encoder_layer.1} parent=11 // pred_fallthru
          _
        // Predicated region
        $region37: #{encoder_layer.1} parent=11 // pred_check
          %p476 = pneg %p244
        $region38: #{encoder_layer.1} parent=11 // pred_check_branch
          %478 = sbr.rel (%p476) target = $region40
        $region39: #{encoder_layer.1} parent=11 // pred_region
          _
        $region40: #{encoder_layer.1} parent=11 // pred_fallthru
          _
        // Predicated region
        $region41: #{encoder_layer.1} parent=11 // pred_check
          %p479 = pneg %p265
        $region42: #{encoder_layer.1} parent=11 // pred_check_branch
          %481 = sbr.rel (%p479) target = $region44
        $region43: #{encoder_layer.1} parent=11 // pred_region
          %s483 = ssub.s32 16, 16
          %484 = vsyncadd [#allocation11], %s483
          %s486 = sshll.u32 [#allocation12], 4
          %s487 = int_to_ptr.vmem [resolvable:$true] %s486
          %489 = dma.hbm_to_vmem [thread:$0]  %s9, 16, %s487, [#allocation11]
        $region44: #{encoder_layer.1} parent=11 // pred_fallthru
          _
        // Predicated region
        $region45: #{encoder_layer.1} parent=11 // pred_check
          %p490 = pneg %p286
        $region46: #{encoder_layer.1} parent=11 // pred_check_branch
          %492 = sbr.rel (%p490) target = $region48
        $region47: #{encoder_layer.1} parent=11 // pred_region
          %s494 = ssub.s32 16, 16
          %495 = vsyncadd [#allocation14], %s494
          %s497 = sshll.u32 [#allocation13], 4
          %s498 = int_to_ptr.vmem [resolvable:$true] %s497
          %500 = dma.hbm_to_vmem [thread:$0]  %s10, 16, %s498, [#allocation14]
        $region48: #{encoder_layer.1} parent=11 // pred_fallthru
          _
        // Predicated region
        $region49: #{encoder_layer.1} parent=11 // pred_check
          %p501 = pneg %p307
        $region50: #{encoder_layer.1} parent=11 // pred_check_branch
          %503 = sbr.rel (%p501) target = $region52
        $region51: #{encoder_layer.1} parent=11 // pred_region
          %s505 = ssub.s32 16, 16
          %506 = vsyncadd [#allocation14], %s505
          %s508 = sshll.u32 [#allocation15], 4
          %s509 = int_to_ptr.vmem [resolvable:$true] %s508
          %511 = dma.hbm_to_vmem [thread:$0]  %s11, 16, %s509, [#allocation14]
        $region52: #{encoder_layer.1} parent=11 // pred_fallthru
          _
        // Predicated region
        $region53: #{encoder_layer.1} parent=11 // pred_check
          %p512 = pneg %p328
        $region54: #{encoder_layer.1} parent=11 // pred_check_branch
          %514 = sbr.rel (%p512) target = $region56
        $region55: #{encoder_layer.1} parent=11 // pred_region
          %s516 = ssub.s32 256, 256
          %517 = vsyncadd [#allocation17], %s516
          %s518 = sshll.u32 [#allocation16], 4
          %s519 = int_to_ptr.vmem [resolvable:$true] %s518
          %524 = dma.hbm_to_vmem [thread:$0]  %s12, 256, %s519, [#allocation17], 64, 64, 4
        $region56: #{encoder_layer.1} parent=11 // pred_fallthru
          _
        // Predicated region
        $region57: #{encoder_layer.1} parent=11 // pred_check
          %p525 = pneg %p349
        $region58: #{encoder_layer.1} parent=11 // pred_check_branch
          %527 = sbr.rel (%p525) target = $region60
        $region59: #{encoder_layer.1} parent=11 // pred_region
          %s529 = ssub.s32 16, 16
          %530 = vsyncadd [#allocation17], %s529
          %s532 = sshll.u32 [#allocation18], 4
          %s533 = int_to_ptr.vmem [resolvable:$true] %s532
          %535 = dma.hbm_to_vmem [thread:$0]  %s13, 16, %s533, [#allocation17]
        $region60: #{encoder_layer.1} parent=11 // pred_fallthru
          _
        // Predicated region
        $region61: #{encoder_layer.1} parent=11 // pred_check
          %p536 = pneg %p370
        $region62: #{encoder_layer.1} parent=11 // pred_check_branch
          %538 = sbr.rel (%p536) target = $region64
        $region63: #{encoder_layer.1} parent=11 // pred_region
          _
        $region64: #{encoder_layer.1} parent=11 // pred_fallthru
          _
        // Predicated region
        $region65: #{encoder_layer.1} parent=11 // pred_check
          %p539 = pneg %p391
        $region66: #{encoder_layer.1} parent=11 // pred_check_branch
          %541 = sbr.rel (%p539) target = $region68
        $region67: #{encoder_layer.1} parent=11 // pred_region
          %s543 = ssub.s32 16, 16
          %544 = vsyncadd [#allocation20], %s543
          %s546 = sshll.u32 [#allocation19], 4
          %s547 = int_to_ptr.vmem [resolvable:$true] %s546
          %549 = dma.hbm_to_vmem [thread:$0]  %s15, 16, %s547, [#allocation20]
        $region68: #{encoder_layer.1} parent=11 // pred_fallthru
          _
      $region12: #{encoder_layer.1} parent=5 // pred_fallthru
        _
      %p550 = scmp.lt.s32.totalorder %s33, 4
      // Predicated region
      $region69: #{encoder_layer.1} parent=5 // pred_check
        %p551 = pneg %p550
      $region70: #{encoder_layer.1} parent=5 // pred_check_branch
        %553 = sbr.rel (%p551) target = $region72
      $region71: #{encoder_layer.1} parent=5 // pred_region
        // Predicated region
        $region73: #{encoder_layer.1} parent=71 // pred_check
          %p554 = pneg %p65
        $region74: #{encoder_layer.1} parent=71 // pred_check_branch
          %556 = sbr.rel (%p554) target = $region76
        $region75: #{encoder_layer.1} parent=71 // pred_region
          %p557 = scmp.lt.s32.totalorder %s40, 1
          %s558 = scalar_select %p557, %s40, 1
          %s559 = smul.addr %s558, 2
          %s560 = smul.addr %s559, 8
          %s561 = scalar_lea.vmem %s0, %s560
        $region76: #{encoder_layer.1} parent=71 // pred_fallthru
          _
        // Predicated region
        $region77: #{encoder_layer.1} parent=71 // pred_check
          %p562 = pneg %p91
        $region78: #{encoder_layer.1} parent=71 // pred_check_branch
          %564 = sbr.rel (%p562) target = $region80
        $region79: #{encoder_layer.1} parent=71 // pred_region
          %s565 = sand.u32 %s81, 1
          %s566 = scalar_lea.sflag [#allocation5], %s565
          %s567 = sand.u32 %s81, 1
          %s568 = scalar_lea.vmem [#allocation4], %s567
          %s570 = ssub.s32 16, 16
          %571 = vsyncadd %s566, %s570
          %s572 = smul.addr %s40, 16
          %s573 = scalar_lea.hbm %s1, %s572
          %s575 = sshll.u32 %s568, 4
          %s576 = int_to_ptr.vmem [resolvable:$true] %s575
          %578 = dma.hbm_to_vmem [thread:$0]  %s573, 16, %s576, %s566
        $region80: #{encoder_layer.1} parent=71 // pred_fallthru
          _
      $region72: #{encoder_layer.1} parent=5 // pred_fallthru
        _
      %p579 = scmp.le.s32.totalorder 1, %s33
      %p580 = scmp.lt.s32.totalorder %s33, 5
      %p581 = pnand %p579, %p580
      %p582 = pneg %p581
      // Predicated region
      $region81: #{encoder_layer.1} parent=5 // pred_check
        _
      $region82: #{encoder_layer.1} parent=5 // pred_check_branch
        %584 = sbr.rel (%p581) target = $region84
      $region83: #{encoder_layer.1} parent=5 // pred_region
        %s585 = ssub.s32 %s33, 1
        %s586 = sand.u32 %s84, 1
        %s587 = scalar_lea.sflag [#allocation5], %s586
        %s588 = sand.u32 %s84, 1
        %s589 = scalar_lea.vmem [#allocation4], %s588
        // Predicated region
        $region85: #{encoder_layer.1} parent=83 // pred_check
          %p590 = pneg %p97
        $region86: #{encoder_layer.1} parent=83 // pred_check_branch
          %592 = sbr.rel (%p590) target = $region88
        $region87: #{encoder_layer.1} parent=83 // pred_region
          %593 = dma.done %s587, 16
        $region88: #{encoder_layer.1} parent=83 // pred_fallthru
          _
        // Predicated region
        $region89: #{encoder_layer.1} parent=83 // pred_check
          %p594 = pneg %p139
        $region90: #{encoder_layer.1} parent=83 // pred_check_branch
          %596 = sbr.rel (%p594) target = $region92
        $region91: #{encoder_layer.1} parent=83 // pred_region
          %597 = dma.done [#allocation8], 16
        $region92: #{encoder_layer.1} parent=83 // pred_fallthru
          _
        // Predicated region
        $region93: #{encoder_layer.1} parent=83 // pred_check
          %p598 = pneg %p181
        $region94: #{encoder_layer.1} parent=83 // pred_check_branch
          %600 = sbr.rel (%p598) target = $region96
        $region95: #{encoder_layer.1} parent=83 // pred_region
          %601 = dma.done [#allocation8], 16
        $region96: #{encoder_layer.1} parent=83 // pred_fallthru
          _
        // Predicated region
        $region97: #{encoder_layer.1} parent=83 // pred_check
          %p602 = pneg %p223
        $region98: #{encoder_layer.1} parent=83 // pred_check_branch
          %604 = sbr.rel (%p602) target = $region100
        $region99: #{encoder_layer.1} parent=83 // pred_region
          %605 = dma.done [#allocation11], 16
        $region100: #{encoder_layer.1} parent=83 // pred_fallthru
          _
        // Predicated region
        $region101: #{encoder_layer.1} parent=83 // pred_check
          %p606 = pneg %p265
        $region102: #{encoder_layer.1} parent=83 // pred_check_branch
          %608 = sbr.rel (%p606) target = $region104
        $region103: #{encoder_layer.1} parent=83 // pred_region
          %609 = dma.done [#allocation11], 16
        $region104: #{encoder_layer.1} parent=83 // pred_fallthru
          _
        // Predicated region
        $region105: #{encoder_layer.1} parent=83 // pred_check
          %p610 = pneg %p286
        $region106: #{encoder_layer.1} parent=83 // pred_check_branch
          %612 = sbr.rel (%p610) target = $region108
        $region107: #{encoder_layer.1} parent=83 // pred_region
          %613 = dma.done [#allocation14], 16
        $region108: #{encoder_layer.1} parent=83 // pred_fallthru
          _
        // Predicated region
        $region109: #{encoder_layer.1} parent=83 // pred_check
          %p614 = pneg %p307
        $region110: #{encoder_layer.1} parent=83 // pred_check_branch
          %616 = sbr.rel (%p614) target = $region112
        $region111: #{encoder_layer.1} parent=83 // pred_region
          %617 = dma.done [#allocation14], 16
        $region112: #{encoder_layer.1} parent=83 // pred_fallthru
          _
        // Predicated region
        $region113: #{encoder_layer.1} parent=83 // pred_check
          %p618 = pneg %p328
        $region114: #{encoder_layer.1} parent=83 // pred_check_branch
          %620 = sbr.rel (%p618) target = $region116
        $region115: #{encoder_layer.1} parent=83 // pred_region
          %621 = dma.done [#allocation17], 256
        $region116: #{encoder_layer.1} parent=83 // pred_fallthru
          _
        // Predicated region
        $region117: #{encoder_layer.1} parent=83 // pred_check
          %p622 = pneg %p349
        $region118: #{encoder_layer.1} parent=83 // pred_check_branch
          %624 = sbr.rel (%p622) target = $region120
        $region119: #{encoder_layer.1} parent=83 // pred_region
          %625 = dma.done [#allocation17], 16
        $region120: #{encoder_layer.1} parent=83 // pred_fallthru
          _
        // Predicated region
        $region121: #{encoder_layer.1} parent=83 // pred_check
          %p626 = pneg %p391
        $region122: #{encoder_layer.1} parent=83 // pred_check_branch
          %628 = sbr.rel (%p626) target = $region124
        $region123: #{encoder_layer.1} parent=83 // pred_region
          %629 = dma.done [#allocation20], 16
        $region124: #{encoder_layer.1} parent=83 // pred_fallthru
          _
        %p630 = scmp.lt.s32.totalorder %s42, 1
        %s631 = scalar_select %p630, %s42, 1
        %s632 = smul.addr %s631, 2
        %s633 = smul.addr %s632, 8
        %s634 = scalar_lea.vmem %s0, %s633
        %p635 = pneg %p71
        %p636 = pneg %p68
        %s637 = sand.u32 %s84, 1
        %s638 = scalar_lea.sflag [#allocation5], %s637
        %s639 = sand.u32 %s84, 1
        %s640 = scalar_lea.vmem [#allocation4], %s639
        %p641 = pneg %p97
        %p642 = pneg %p94
        %p643 = pneg %p118
        %p644 = pneg %p115
        %p645 = pneg %p139
        %p646 = pneg %p136
        %p647 = pneg %p160
        %p648 = pneg %p157
        %p649 = pneg %p181
        %p650 = pneg %p178
        %p651 = pneg %p202
        %p652 = pneg %p199
        %p653 = pneg %p223
        %p654 = pneg %p220
        %p655 = pneg %p244
        %p656 = pneg %p241
        %p657 = pneg %p265
        %p658 = pneg %p262
        %p659 = pneg %p286
        %p660 = pneg %p283
        %p661 = pneg %p307
        %p662 = pneg %p304
        %p663 = pneg %p328
        %p664 = pneg %p325
        %p665 = pneg %p349
        %p666 = pneg %p346
        %p667 = pneg %p370
        %p668 = pneg %p367
        %p669 = pneg %p391
        %p670 = pneg %p388
        %p671 = pneg %p419
        %p672 = pneg %p416
        %s673 = sand.u32 %s406, 1
        %s674 = scalar_lea.sflag [#allocation6], %s673
        %s675 = sand.u32 %s406, 1
        %s676 = smul.addr %s675, 8
        %s677 = scalar_lea.vmem [#allocation21], %s676
        %p678 = scmp.lt.s32.totalorder %s42, 1
        %s679 = scalar_select %p678, %s42, 1
        %s680 = smul.addr %s679, 2
        %s681 = smul.addr %s680, 8
        %s682 = scalar_lea.vmem %s0, %s681
        %v684 = vld [vmem:[%s2] sm:$0x1]
        %v685 = vld [vmem:[#allocation7] sm:$0x1]
        %p686 = scmp.eq.s32.totalorder %s43, 0
        // Predicated region
        $region125: #{encoder_layer.1} parent=83 // pred_check
          %p687 = pneg %p686
        $region126: #{encoder_layer.1} parent=83 // pred_check_branch
          %689 = sbr.rel (%p687) target = $region128
        $region127: #{encoder_layer.1} parent=83 // pred_region
          %v690 = vld [vmem:[%s682] sm:$0xff]
          %v691 = vld [vmem:[%s682 + $0x8] sm:$0xff]
          %vm692 = vcmask 261120
          %v693 = vsel %vm692, %v690, 0.0
          %694 = vadd.xlane.f32.xlu0 %v693
          %v695 = vpop.xlane.xlu0 %694
          %v696 = vsel %vm692, %v691, 0.0
          %697 = vadd.xlane.f32.xlu0 %v696
          %v698 = vpop.xlane.xlu0 %697
          %v699 = vrcp.pop 32.0
          %v700 = vmul.f32 %v695, %v699
          %v701 = vmul.f32 %v698, %v699
          %v702 = vsub.f32 %v690, %v700
          %v703 = vsub.f32 %v691, %v701
          %v704 = vmul.f32 %v702, %v702
          %v705 = vmul.f32 %v703, %v703
          %v706 = vsel %vm692, %v704, 0.0
          %707 = vadd.xlane.f32.xlu0 %v706
          %v708 = vpop.xlane.xlu0 %707
          %v709 = vsel %vm692, %v705, 0.0
          %710 = vadd.xlane.f32.xlu0 %v709
          %v711 = vpop.xlane.xlu0 %710
          %v712 = vrcp.pop 31.0
          %v713 = vmul.f32 %v708, %v712
          %v714 = vmul.f32 %v711, %v712
          %v715 = vrsqrt.pop %v713
          %v716 = vmul.f32 %v713, %v715
          %vm717 = vcmp.eq.f32.partialorder %v713, inf
          %v718 = vsel %vm717, %v713, %v716
          %vm719 = vcmp.eq.f32.partialorder %v713, 0.0
          %v720 = vand.u32 %v713, 2147483648
          %v721 = vsel %vm719, %v720, %v718
          %v722 = vrsqrt.pop %v714
          %v723 = vmul.f32 %v714, %v722
          %vm724 = vcmp.eq.f32.partialorder %v714, inf
          %v725 = vsel %vm724, %v714, %v723
          %vm726 = vcmp.eq.f32.partialorder %v714, 0.0
          %v727 = vand.u32 %v714, 2147483648
          %v728 = vsel %vm726, %v727, %v725
          %v729 = vadd.f32 %v721, 1e-06
          %v730 = vadd.f32 %v728, 1e-06
          %v731 = vrcp.pop %v729
          %v732 = vmul.f32 1.0, %v731
          %v733 = vrcp.pop %v730
          %v734 = vmul.f32 1.0, %v733
          %v736 = vlaneseq
          %v737 = vshrl.u32 %v736, 7
          %v738 = vsub.s32 0, %v737
          %v739 = vrot.slane %v684, %v738
          %v741 = vmul.f32 %v739, %v702
          %v742 = vmul.f32 %v739, %v703
          %v743 = vmul.f32 %v741, %v732
          %v744 = vmul.f32 %v742, %v734
          %v746 = vlaneseq
          %v747 = vshrl.u32 %v746, 7
          %v748 = vsub.s32 0, %v747
          %v749 = vrot.slane %v685, %v748
          %v751 = vadd.f32 %v743, %v749
          %v752 = vadd.f32 %v744, %v749
          %v753 = vpack.c.bf16 %v752, %v751
          %v754 = vld [vmem:[%s6] sm:$0xf]
          %v755 = vld [vmem:[%s6 + $0x4] sm:$0xf]
          %v756 = vld [vmem:[%s6 + $0x8] sm:$0xf]
          %v757 = vld [vmem:[%s6 + $0xc] sm:$0xf]
          %v758 = vld [vmem:[#allocation10] sm:$0x1]
          %v760 = vlaneseq
          %v761 = vshrl.u32 %v760, 7
          %v762 = vsub.s32 0, %v761
          %v763 = vrot.slane %v758, %v762
          %v769 = vunpack.c.l.b16 %v754
          %v770 = vunpack.c.l.b16 %v755
          %v771 = vunpack.c.l.b16 %v756
          %v772 = vunpack.c.l.b16 %v757
          %v773 = vpack.c.b16 %v770, %v769
          %v774 = vpack.c.b16 %v772, %v771
          %v778 = vsel %vm692, %v753, 0
          %780 = vmatprep.subr.bf16.mxu0 0
          %781 = vmatpush1.bf16.msra.mxu0 %v773
          %782 = vmatprep.subr.bf16.mxu0 0
          %783 = vmatpush1.bf16.msra.mxu0 %v774
          %784 = vmatprep.subr.bf16.mxu0 0
          %785 = vmatpush1.bf16.msra.mxu0 0
          %786 = vmatprep.subr.bf16.mxu0 0
          %787 = vmatpush1.bf16.msra.mxu0 0
          %788 = vmatprep.subr.bf16.mxu0 0
          %789 = vmatpush1.bf16.msra.mxu0 0
          %790 = vmatprep.subr.bf16.mxu0 0
          %791 = vmatpush1.bf16.msra.mxu0 0
          %792 = vmatprep.subr.bf16.mxu0 0
          %793 = vmatpush1.bf16.msra.mxu0 0
          %794 = vmatprep.subr.bf16.mxu0 0
          %795 = vmatpush1.bf16.msra.mxu0 0
          %796 = vmatprep.subr.bf16.mxu0 0
          %797 = vmatpush1.bf16.msra.mxu0 0
          %798 = vmatprep.subr.bf16.mxu0 0
          %799 = vmatpush1.bf16.msra.mxu0 0
          %800 = vmatprep.subr.bf16.mxu0 0
          %801 = vmatpush1.bf16.msra.mxu0 0
          %802 = vmatprep.subr.bf16.mxu0 0
          %803 = vmatpush1.bf16.msra.mxu0 0
          %804 = vmatprep.subr.bf16.mxu0 0
          %805 = vmatpush1.bf16.msra.mxu0 0
          %806 = vmatprep.subr.bf16.mxu0 0
          %807 = vmatpush1.bf16.msra.mxu0 0
          %808 = vmatprep.subr.bf16.mxu0 0
          %809 = vmatpush1.bf16.msra.mxu0 0
          %810 = vmatprep.subr.bf16.mxu0 0
          %811 = vmatpush1.bf16.msra.mxu0 0
          %812 = vmatprep.mubr.bf16.mxu0 0
          %813 = vmatmul.mubr.bf16.gmra.mrb[0].mxu0 %v778
          %v814 = vpop.f32.mrb[0].mxu0
          %v815 = vadd.f32 %v763, %v814
          %v816 = vpop.f32.mrb[0].mxu0
          %v817 = vpop.f32.mrb[0].mxu0
          %v818 = vadd.f32 %v763, %v817
          %v819 = vpop.f32.mrb[0].mxu0
          %820 = vdwg.mxu0
          %823 = vrot.lane.b32.xlu0 %v815, 120
          %v824 = vpop.permute.xlu0 %823
          %825 = vrot.lane.b32.xlu0 %v818, 120
          %v826 = vpop.permute.xlu0 %825
          %829 = vrot.lane.b32.xlu0 %v815, 112
          %v830 = vpop.permute.xlu0 %829
          %831 = vrot.lane.b32.xlu0 %v818, 112
          %v832 = vpop.permute.xlu0 %831
          %835 = vrot.lane.b32.xlu0 %v815, 104
          %v836 = vpop.permute.xlu0 %835
          %837 = vrot.lane.b32.xlu0 %v818, 104
          %v838 = vpop.permute.xlu0 %837
          %v841 = vpack.c.bf16 %v818, %v815
          %v842 = vpack.c.bf16 %v826, %v824
          %v843 = vpack.c.bf16 %v832, %v830
          %v844 = vpack.c.bf16 %v838, %v836
          %vm845 = vcmask 64512
          %846 = vst.msk [vmem:[#allocation2] sm:$0xff] %vm845, %v841
          %847 = vst.msk [vmem:[#allocation2 + $0x8] sm:$0xff] %vm845, %v842
          %848 = vst.msk [vmem:[#allocation2 + $0x10] sm:$0xff] %vm845, %v843
          %849 = vst.msk [vmem:[#allocation2 + $0x18] sm:$0xff] %vm845, %v844
          %854 = vrot.lane.b32.xlu0 %v841, 96
          %v855 = vpop.permute.xlu0 %854
          %856 = vrot.lane.b32.xlu0 %v842, 96
          %v857 = vpop.permute.xlu0 %856
          %858 = vrot.lane.b32.xlu0 %v843, 96
          %v859 = vpop.permute.xlu0 %858
          %860 = vrot.lane.b32.xlu0 %v844, 96
          %v861 = vpop.permute.xlu0 %860
          %866 = vst.msk [vmem:[#allocation3] sm:$0xff] %vm845, %v855
          %867 = vst.msk [vmem:[#allocation3 + $0x8] sm:$0xff] %vm845, %v857
          %868 = vst.msk [vmem:[#allocation3 + $0x10] sm:$0xff] %vm845, %v859
          %869 = vst.msk [vmem:[#allocation3 + $0x18] sm:$0xff] %vm845, %v861
        $region128: #{encoder_layer.1} parent=83 // pred_fallthru
          _
        %s870 = smul.u32 %s43, 8
        %s871 = scalar_lea.vmem %s682, %s870
        %v872 = vld [vmem:[%s871] sm:$0xff]
        %vm873 = vcmask 261120
        %v874 = vsel %vm873, %v872, 0.0
        %875 = vadd.xlane.f32.xlu0 %v874
        %v876 = vpop.xlane.xlu0 %875
        %v877 = vrcp.pop 32.0
        %v878 = vmul.f32 %v876, %v877
        %v879 = vsub.f32 %v872, %v878
        %v880 = vmul.f32 %v879, %v879
        %v881 = vsel %vm873, %v880, 0.0
        %882 = vadd.xlane.f32.xlu0 %v881
        %v883 = vpop.xlane.xlu0 %882
        %v884 = vrcp.pop 31.0
        %v885 = vmul.f32 %v883, %v884
        %v886 = vrsqrt.pop %v885
        %v887 = vmul.f32 %v885, %v886
        %vm888 = vcmp.eq.f32.partialorder %v885, inf
        %v889 = vsel %vm888, %v885, %v887
        %vm890 = vcmp.eq.f32.partialorder %v885, 0.0
        %v891 = vand.u32 %v885, 2147483648
        %v892 = vsel %vm890, %v891, %v889
        %v893 = vadd.f32 %v892, 1e-06
        %v894 = vrcp.pop %v893
        %v895 = vmul.f32 1.0, %v894
        %v897 = vlaneseq
        %v898 = vshrl.u32 %v897, 7
        %v899 = vsub.s32 0, %v898
        %v900 = vrot.slane %v684, %v899
        %v902 = vmul.f32 %v900, %v879
        %v903 = vmul.f32 %v902, %v895
        %v905 = vlaneseq
        %v906 = vshrl.u32 %v905, 7
        %v907 = vsub.s32 0, %v906
        %v908 = vrot.slane %v685, %v907
        %v910 = vadd.f32 %v903, %v908
        %v911 = vpack.c.bf16 %v910, %v910
        %v912 = vld [vmem:[%s4] sm:$0xf]
        %v913 = vld [vmem:[%s4 + $0x4] sm:$0xf]
        %v914 = vld [vmem:[%s4 + $0x8] sm:$0xf]
        %v915 = vld [vmem:[%s4 + $0xc] sm:$0xf]
        %v916 = vld [vmem:[#allocation9] sm:$0x1]
        %v918 = vlaneseq
        %v919 = vshrl.u32 %v918, 7
        %v920 = vsub.s32 0, %v919
        %v921 = vrot.slane %v916, %v920
        %v927 = vunpack.c.l.b16 %v912
        %v928 = vunpack.c.l.b16 %v913
        %v929 = vunpack.c.l.b16 %v914
        %v930 = vunpack.c.l.b16 %v915
        %v931 = vpack.c.b16 %v928, %v927
        %v932 = vpack.c.b16 %v930, %v929
        %v936 = vsel %vm873, %v911, 0
        %938 = vmatprep.subr.bf16.mxu0 0
        %939 = vmatpush1.bf16.msra.mxu0 %v931
        %940 = vmatprep.subr.bf16.mxu0 0
        %941 = vmatpush1.bf16.msra.mxu0 %v932
        %942 = vmatprep.subr.bf16.mxu0 0
        %943 = vmatpush1.bf16.msra.mxu0 0
        %944 = vmatprep.subr.bf16.mxu0 0
        %945 = vmatpush1.bf16.msra.mxu0 0
        %946 = vmatprep.subr.bf16.mxu0 0
        %947 = vmatpush1.bf16.msra.mxu0 0
        %948 = vmatprep.subr.bf16.mxu0 0
        %949 = vmatpush1.bf16.msra.mxu0 0
        %950 = vmatprep.subr.bf16.mxu0 0
        %951 = vmatpush1.bf16.msra.mxu0 0
        %952 = vmatprep.subr.bf16.mxu0 0
        %953 = vmatpush1.bf16.msra.mxu0 0
        %954 = vmatprep.subr.bf16.mxu0 0
        %955 = vmatpush1.bf16.msra.mxu0 0
        %956 = vmatprep.subr.bf16.mxu0 0
        %957 = vmatpush1.bf16.msra.mxu0 0
        %958 = vmatprep.subr.bf16.mxu0 0
        %959 = vmatpush1.bf16.msra.mxu0 0
        %960 = vmatprep.subr.bf16.mxu0 0
        %961 = vmatpush1.bf16.msra.mxu0 0
        %962 = vmatprep.subr.bf16.mxu0 0
        %963 = vmatpush1.bf16.msra.mxu0 0
        %964 = vmatprep.subr.bf16.mxu0 0
        %965 = vmatpush1.bf16.msra.mxu0 0
        %966 = vmatprep.subr.bf16.mxu0 0
        %967 = vmatpush1.bf16.msra.mxu0 0
        %968 = vmatprep.subr.bf16.mxu0 0
        %969 = vmatpush1.bf16.msra.mxu0 0
        %970 = vmatprep.mubr.bf16.mxu0 0
        %971 = vmatmul.mubr.bf16.gmra.mrb[0].mxu0 %v936
        %v972 = vpop.f32.mrb[0].mxu0
        %v973 = vadd.f32 %v921, %v972
        %v974 = vpop.f32.mrb[0].mxu0
        %v975 = vpop.f32.mrb[0].mxu0
        %v976 = vpop.f32.mrb[0].mxu0
        %977 = vdwg.mxu0
        %979 = vrot.lane.b32.xlu0 %v973, 120
        %v980 = vpop.permute.xlu0 %979
        %982 = vrot.lane.b32.xlu0 %v973, 112
        %v983 = vpop.permute.xlu0 %982
        %985 = vrot.lane.b32.xlu0 %v973, 104
        %v986 = vpop.permute.xlu0 %985
        %v988 = vpack.c.bf16 %v973, %v973
        %v989 = vpack.c.bf16 %v980, %v980
        %v990 = vpack.c.bf16 %v983, %v983
        %v991 = vpack.c.bf16 %v986, %v986
        %v992 = vld [vmem:[%s589] sm:$0x1]
        %v993 = vld [vmem:[#allocation2] sm:$0xff]
        %v994 = vld [vmem:[#allocation2 + $0x8] sm:$0xff]
        %v995 = vld [vmem:[#allocation2 + $0x10] sm:$0xff]
        %v996 = vld [vmem:[#allocation2 + $0x18] sm:$0xff]
        %vm997 = vcmask 64512
        %v999 = vsel %vm997, %v988, 0
        %v1002 = vsel %vm997, %v993, 0
        %1004 = vmatprep.subr.bf16.mxu0 0
        %1005 = vmatpush1.bf16.xpose.msra.mxu0 %v1002
        %1006 = vmatprep.subr.bf16.mxu0 0
        %1007 = vmatpush1.bf16.xpose.msra.mxu0 0
        %1008 = vmatprep.subr.bf16.mxu0 0
        %1009 = vmatpush1.bf16.xpose.msra.mxu0 0
        %1010 = vmatprep.subr.bf16.mxu0 0
        %1011 = vmatpush1.bf16.xpose.msra.mxu0 0
        %1012 = vmatprep.subr.bf16.mxu0 0
        %1013 = vmatpush1.bf16.xpose.msra.mxu0 0
        %1014 = vmatprep.subr.bf16.mxu0 0
        %1015 = vmatpush1.bf16.xpose.msra.mxu0 0
        %1016 = vmatprep.subr.bf16.mxu0 0
        %1017 = vmatpush1.bf16.xpose.msra.mxu0 0
        %1018 = vmatprep.subr.bf16.mxu0 0
        %1019 = vmatpush1.bf16.xpose.msra.mxu0 0
        %1020 = vmatprep.subr.bf16.mxu0 0
        %1021 = vmatpush1.bf16.xpose.msra.mxu0 0
        %1022 = vmatprep.subr.bf16.mxu0 0
        %1023 = vmatpush1.bf16.xpose.msra.mxu0 0
        %1024 = vmatprep.subr.bf16.mxu0 0
        %1025 = vmatpush1.bf16.xpose.msra.mxu0 0
        %1026 = vmatprep.subr.bf16.mxu0 0
        %1027 = vmatpush1.bf16.xpose.msra.mxu0 0
        %1028 = vmatprep.subr.bf16.mxu0 0
        %1029 = vmatpush1.bf16.xpose.msra.mxu0 0
        %1030 = vmatprep.subr.bf16.mxu0 0
        %1031 = vmatpush1.bf16.xpose.msra.mxu0 0
        %1032 = vmatprep.subr.bf16.mxu0 0
        %1033 = vmatpush1.bf16.xpose.msra.mxu0 0
        %1034 = vmatprep.subr.bf16.mxu0 0
        %1035 = vmatpush1.bf16.xpose.msra.mxu0 0
        %1036 = vmatprep.mubr.bf16.mxu0 0
        %1037 = vmatmul.mubr.bf16.gmra.mrb[0].mxu0 %v999
        %v1038 = vpop.f32.mrb[0].mxu0
        %v1039 = vadd.f32 0.0, %v1038
        %v1040 = vpop.f32.mrb[0].mxu0
        %v1041 = vpop.f32.mrb[0].mxu0
        %v1042 = vpop.f32.mrb[0].mxu0
        %1043 = vdwg.mxu0
        %v1045 = vsel %vm997, %v989, 0
        %v1048 = vsel %vm997, %v994, 0
        %1050 = vmatprep.subr.bf16.mxu0 0
        %1051 = vmatpush1.bf16.xpose.msra.mxu0 %v1048
        %1052 = vmatprep.subr.bf16.mxu0 0
        %1053 = vmatpush1.bf16.xpose.msra.mxu0 0
        %1054 = vmatprep.subr.bf16.mxu0 0
        %1055 = vmatpush1.bf16.xpose.msra.mxu0 0
        %1056 = vmatprep.subr.bf16.mxu0 0
        %1057 = vmatpush1.bf16.xpose.msra.mxu0 0
        %1058 = vmatprep.subr.bf16.mxu0 0
        %1059 = vmatpush1.bf16.xpose.msra.mxu0 0
        %1060 = vmatprep.subr.bf16.mxu0 0
        %1061 = vmatpush1.bf16.xpose.msra.mxu0 0
        %1062 = vmatprep.subr.bf16.mxu0 0
        %1063 = vmatpush1.bf16.xpose.msra.mxu0 0
        %1064 = vmatprep.subr.bf16.mxu0 0
        %1065 = vmatpush1.bf16.xpose.msra.mxu0 0
        %1066 = vmatprep.subr.bf16.mxu0 0
        %1067 = vmatpush1.bf16.xpose.msra.mxu0 0
        %1068 = vmatprep.subr.bf16.mxu0 0
        %1069 = vmatpush1.bf16.xpose.msra.mxu0 0
        %1070 = vmatprep.subr.bf16.mxu0 0
        %1071 = vmatpush1.bf16.xpose.msra.mxu0 0
        %1072 = vmatprep.subr.bf16.mxu0 0
        %1073 = vmatpush1.bf16.xpose.msra.mxu0 0
        %1074 = vmatprep.subr.bf16.mxu0 0
        %1075 = vmatpush1.bf16.xpose.msra.mxu0 0
        %1076 = vmatprep.subr.bf16.mxu0 0
        %1077 = vmatpush1.bf16.xpose.msra.mxu0 0
        %1078 = vmatprep.subr.bf16.mxu0 0
        %1079 = vmatpush1.bf16.xpose.msra.mxu0 0
        %1080 = vmatprep.subr.bf16.mxu0 0
        %1081 = vmatpush1.bf16.xpose.msra.mxu0 0
        %1082 = vmatprep.mubr.bf16.mxu0 0
        %1083 = vmatmul.mubr.bf16.gmra.mrb[0].mxu0 %v1045
        %v1084 = vpop.f32.mrb[0].mxu0
        %v1085 = vadd.f32 0.0, %v1084
        %v1086 = vpop.f32.mrb[0].mxu0
        %v1087 = vpop.f32.mrb[0].mxu0
        %v1088 = vpop.f32.mrb[0].mxu0
        %1089 = vdwg.mxu0
        %v1091 = vsel %vm997, %v990, 0
        %v1094 = vsel %vm997, %v995, 0
        %1096 = vmatprep.subr.bf16.mxu0 0
        %1097 = vmatpush1.bf16.xpose.msra.mxu0 %v1094
        %1098 = vmatprep.subr.bf16.mxu0 0
        %1099 = vmatpush1.bf16.xpose.msra.mxu0 0
        %1100 = vmatprep.subr.bf16.mxu0 0
        %1101 = vmatpush1.bf16.xpose.msra.mxu0 0
        %1102 = vmatprep.subr.bf16.mxu0 0
        %1103 = vmatpush1.bf16.xpose.msra.mxu0 0
        %1104 = vmatprep.subr.bf16.mxu0 0
        %1105 = vmatpush1.bf16.xpose.msra.mxu0 0
        %1106 = vmatprep.subr.bf16.mxu0 0
        %1107 = vmatpush1.bf16.xpose.msra.mxu0 0
        %1108 = vmatprep.subr.bf16.mxu0 0
        %1109 = vmatpush1.bf16.xpose.msra.mxu0 0
        %1110 = vmatprep.subr.bf16.mxu0 0
        %1111 = vmatpush1.bf16.xpose.msra.mxu0 0
        %1112 = vmatprep.subr.bf16.mxu0 0
        %1113 = vmatpush1.bf16.xpose.msra.mxu0 0
        %1114 = vmatprep.subr.bf16.mxu0 0
        %1115 = vmatpush1.bf16.xpose.msra.mxu0 0
        %1116 = vmatprep.subr.bf16.mxu0 0
        %1117 = vmatpush1.bf16.xpose.msra.mxu0 0
        %1118 = vmatprep.subr.bf16.mxu0 0
        %1119 = vmatpush1.bf16.xpose.msra.mxu0 0
        %1120 = vmatprep.subr.bf16.mxu0 0
        %1121 = vmatpush1.bf16.xpose.msra.mxu0 0
        %1122 = vmatprep.subr.bf16.mxu0 0
        %1123 = vmatpush1.bf16.xpose.msra.mxu0 0
        %1124 = vmatprep.subr.bf16.mxu0 0
        %1125 = vmatpush1.bf16.xpose.msra.mxu0 0
        %1126 = vmatprep.subr.bf16.mxu0 0
        %1127 = vmatpush1.bf16.xpose.msra.mxu0 0
        %1128 = vmatprep.mubr.bf16.mxu0 0
        %1129 = vmatmul.mubr.bf16.gmra.mrb[0].mxu0 %v1091
        %v1130 = vpop.f32.mrb[0].mxu0
        %v1131 = vadd.f32 0.0, %v1130
        %v1132 = vpop.f32.mrb[0].mxu0
        %v1133 = vpop.f32.mrb[0].mxu0
        %v1134 = vpop.f32.mrb[0].mxu0
        %1135 = vdwg.mxu0
        %v1137 = vsel %vm997, %v991, 0
        %v1140 = vsel %vm997, %v996, 0
        %1142 = vmatprep.subr.bf16.mxu0 0
        %1143 = vmatpush1.bf16.xpose.msra.mxu0 %v1140
        %1144 = vmatprep.subr.bf16.mxu0 0
        %1145 = vmatpush1.bf16.xpose.msra.mxu0 0
        %1146 = vmatprep.subr.bf16.mxu0 0
        %1147 = vmatpush1.bf16.xpose.msra.mxu0 0
        %1148 = vmatprep.subr.bf16.mxu0 0
        %1149 = vmatpush1.bf16.xpose.msra.mxu0 0
        %1150 = vmatprep.subr.bf16.mxu0 0
        %1151 = vmatpush1.bf16.xpose.msra.mxu0 0
        %1152 = vmatprep.subr.bf16.mxu0 0
        %1153 = vmatpush1.bf16.xpose.msra.mxu0 0
        %1154 = vmatprep.subr.bf16.mxu0 0
        %1155 = vmatpush1.bf16.xpose.msra.mxu0 0
        %1156 = vmatprep.subr.bf16.mxu0 0
        %1157 = vmatpush1.bf16.xpose.msra.mxu0 0
        %1158 = vmatprep.subr.bf16.mxu0 0
        %1159 = vmatpush1.bf16.xpose.msra.mxu0 0
        %1160 = vmatprep.subr.bf16.mxu0 0
        %1161 = vmatpush1.bf16.xpose.msra.mxu0 0
        %1162 = vmatprep.subr.bf16.mxu0 0
        %1163 = vmatpush1.bf16.xpose.msra.mxu0 0
        %1164 = vmatprep.subr.bf16.mxu0 0
        %1165 = vmatpush1.bf16.xpose.msra.mxu0 0
        %1166 = vmatprep.subr.bf16.mxu0 0
        %1167 = vmatpush1.bf16.xpose.msra.mxu0 0
        %1168 = vmatprep.subr.bf16.mxu0 0
        %1169 = vmatpush1.bf16.xpose.msra.mxu0 0
        %1170 = vmatprep.subr.bf16.mxu0 0
        %1171 = vmatpush1.bf16.xpose.msra.mxu0 0
        %1172 = vmatprep.subr.bf16.mxu0 0
        %1173 = vmatpush1.bf16.xpose.msra.mxu0 0
        %1174 = vmatprep.mubr.bf16.mxu0 0
        %1175 = vmatmul.mubr.bf16.gmra.mrb[0].mxu0 %v1137
        %v1176 = vpop.f32.mrb[0].mxu0
        %v1177 = vadd.f32 0.0, %v1176
        %v1178 = vpop.f32.mrb[0].mxu0
        %v1179 = vpop.f32.mrb[0].mxu0
        %v1180 = vpop.f32.mrb[0].mxu0
        %1181 = vdwg.mxu0
        %vm1182 = vcmp.gt.f32.partialorder %v992, 0.0
        %v1183 = vsel %vm1182, 1, 0
        %v1184 = vlaneseq
        %v1185 = vshrl.u32 %v1184, 7
        %v1186 = vsub.s32 0, %v1185
        %v1187 = vrot.slane %v1183, %v1186
        %vm1188 = vcmp.eq.s32.totalorder %v1187, 1
        %v1189 = vsel %vm1188, %v1039, -1e+09
        %v1190 = vsel %vm1188, %v1085, -1e+09
        %v1191 = vsel %vm1188, %v1131, -1e+09
        %v1192 = vsel %vm1188, %v1177, -1e+09
        %vm1193 = vcmask 130048
        %v1194 = vsel %vm1193, %v1189, -inf
        %1195 = vmax.xlane.f32.xlu0 %v1194
        %v1196 = vpop.xlane.xlu0 %1195
        %v1197 = vsel %vm1193, %v1190, -inf
        %1198 = vmax.xlane.f32.xlu0 %v1197
        %v1199 = vpop.xlane.xlu0 %1198
        %v1200 = vsel %vm1193, %v1191, -inf
        %1201 = vmax.xlane.f32.xlu0 %v1200
        %v1202 = vpop.xlane.xlu0 %1201
        %v1203 = vsel %vm1193, %v1192, -inf
        %1204 = vmax.xlane.f32.xlu0 %v1203
        %v1205 = vpop.xlane.xlu0 %1204
        %v1206 = vsub.f32 %v1189, %v1196
        %v1207 = vsub.f32 %v1190, %v1199
        %v1208 = vsub.f32 %v1191, %v1202
        %v1209 = vsub.f32 %v1192, %v1205
        %v1210 = vmul.f32 %v1206, 1.442695
        %v1211 = vpow.pop %v1210
        %v1212 = vmul.f32 %v1207, 1.442695
        %v1213 = vpow.pop %v1212
        %v1214 = vmul.f32 %v1208, 1.442695
        %v1215 = vpow.pop %v1214
        %v1216 = vmul.f32 %v1209, 1.442695
        %v1217 = vpow.pop %v1216
        %v1218 = vsel %vm1193, %v1211, 0.0
        %1219 = vadd.xlane.f32.xlu0 %v1218
        %v1220 = vpop.xlane.xlu0 %1219
        %v1221 = vsel %vm1193, %v1213, 0.0
        %1222 = vadd.xlane.f32.xlu0 %v1221
        %v1223 = vpop.xlane.xlu0 %1222
        %v1224 = vsel %vm1193, %v1215, 0.0
        %1225 = vadd.xlane.f32.xlu0 %v1224
        %v1226 = vpop.xlane.xlu0 %1225
        %v1227 = vsel %vm1193, %v1217, 0.0
        %1228 = vadd.xlane.f32.xlu0 %v1227
        %v1229 = vpop.xlane.xlu0 %1228
        %v1230 = vrcp.pop %v1220
        %v1231 = vrcp.pop %v1223
        %v1232 = vrcp.pop %v1226
        %v1233 = vrcp.pop %v1229
        %v1234 = vmul.f32 %v1211, %v1230
        %v1235 = vmul.f32 %v1213, %v1231
        %v1236 = vmul.f32 %v1215, %v1232
        %v1237 = vmul.f32 %v1217, %v1233
        %v1238 = vpack.c.bf16 %v1234, %v1234
        %v1239 = vpack.c.bf16 %v1235, %v1235
        %v1240 = vpack.c.bf16 %v1236, %v1236
        %v1241 = vpack.c.bf16 %v1237, %v1237
        %v1242 = vld [vmem:[#allocation3] sm:$0xff]
        %v1243 = vld [vmem:[#allocation3 + $0x8] sm:$0xff]
        %v1244 = vld [vmem:[#allocation3 + $0x10] sm:$0xff]
        %v1245 = vld [vmem:[#allocation3 + $0x18] sm:$0xff]
        %v1247 = vsel %vm1193, %v1238, 0
        %1249 = vmatprep.subr.bf16.mxu0 0
        %1250 = vmatpush1.bf16.msra.mxu0 %v1242
        %1251 = vmatprep.subr.bf16.mxu0 0
        %1252 = vmatpush1.bf16.msra.mxu0 0
        %1253 = vmatprep.subr.bf16.mxu0 0
        %1254 = vmatpush1.bf16.msra.mxu0 0
        %1255 = vmatprep.subr.bf16.mxu0 0
        %1256 = vmatpush1.bf16.msra.mxu0 0
        %1257 = vmatprep.subr.bf16.mxu0 0
        %1258 = vmatpush1.bf16.msra.mxu0 0
        %1259 = vmatprep.subr.bf16.mxu0 0
        %1260 = vmatpush1.bf16.msra.mxu0 0
        %1261 = vmatprep.subr.bf16.mxu0 0
        %1262 = vmatpush1.bf16.msra.mxu0 0
        %1263 = vmatprep.subr.bf16.mxu0 0
        %1264 = vmatpush1.bf16.msra.mxu0 0
        %1265 = vmatprep.subr.bf16.mxu0 0
        %1266 = vmatpush1.bf16.msra.mxu0 0
        %1267 = vmatprep.subr.bf16.mxu0 0
        %1268 = vmatpush1.bf16.msra.mxu0 0
        %1269 = vmatprep.subr.bf16.mxu0 0
        %1270 = vmatpush1.bf16.msra.mxu0 0
        %1271 = vmatprep.subr.bf16.mxu0 0
        %1272 = vmatpush1.bf16.msra.mxu0 0
        %1273 = vmatprep.subr.bf16.mxu0 0
        %1274 = vmatpush1.bf16.msra.mxu0 0
        %1275 = vmatprep.subr.bf16.mxu0 0
        %1276 = vmatpush1.bf16.msra.mxu0 0
        %1277 = vmatprep.subr.bf16.mxu0 0
        %1278 = vmatpush1.bf16.msra.mxu0 0
        %1279 = vmatprep.subr.bf16.mxu0 0
        %1280 = vmatpush1.bf16.msra.mxu0 0
        %1281 = vmatprep.mubr.bf16.mxu0 0
        %1282 = vmatmul.mubr.bf16.gmra.mrb[0].mxu0 %v1247
        %v1283 = vpop.f32.mrb[0].mxu0
        %v1284 = vadd.f32 0.0, %v1283
        %v1285 = vpop.f32.mrb[0].mxu0
        %v1286 = vpop.f32.mrb[0].mxu0
        %v1287 = vpop.f32.mrb[0].mxu0
        %1288 = vdwg.mxu0
        %v1290 = vsel %vm1193, %v1239, 0
        %1292 = vmatprep.subr.bf16.mxu0 0
        %1293 = vmatpush1.bf16.msra.mxu0 %v1243
        %1294 = vmatprep.subr.bf16.mxu0 0
        %1295 = vmatpush1.bf16.msra.mxu0 0
        %1296 = vmatprep.subr.bf16.mxu0 0
        %1297 = vmatpush1.bf16.msra.mxu0 0
        %1298 = vmatprep.subr.bf16.mxu0 0
        %1299 = vmatpush1.bf16.msra.mxu0 0
        %1300 = vmatprep.subr.bf16.mxu0 0
        %1301 = vmatpush1.bf16.msra.mxu0 0
        %1302 = vmatprep.subr.bf16.mxu0 0
        %1303 = vmatpush1.bf16.msra.mxu0 0
        %1304 = vmatprep.subr.bf16.mxu0 0
        %1305 = vmatpush1.bf16.msra.mxu0 0
        %1306 = vmatprep.subr.bf16.mxu0 0
        %1307 = vmatpush1.bf16.msra.mxu0 0
        %1308 = vmatprep.subr.bf16.mxu0 0
        %1309 = vmatpush1.bf16.msra.mxu0 0
        %1310 = vmatprep.subr.bf16.mxu0 0
        %1311 = vmatpush1.bf16.msra.mxu0 0
        %1312 = vmatprep.subr.bf16.mxu0 0
        %1313 = vmatpush1.bf16.msra.mxu0 0
        %1314 = vmatprep.subr.bf16.mxu0 0
        %1315 = vmatpush1.bf16.msra.mxu0 0
        %1316 = vmatprep.subr.bf16.mxu0 0
        %1317 = vmatpush1.bf16.msra.mxu0 0
        %1318 = vmatprep.subr.bf16.mxu0 0
        %1319 = vmatpush1.bf16.msra.mxu0 0
        %1320 = vmatprep.subr.bf16.mxu0 0
        %1321 = vmatpush1.bf16.msra.mxu0 0
        %1322 = vmatprep.subr.bf16.mxu0 0
        %1323 = vmatpush1.bf16.msra.mxu0 0
        %1324 = vmatprep.mubr.bf16.mxu0 0
        %1325 = vmatmul.mubr.bf16.gmra.mrb[0].mxu0 %v1290
        %v1326 = vpop.f32.mrb[0].mxu0
        %v1327 = vadd.f32 0.0, %v1326
        %v1328 = vpop.f32.mrb[0].mxu0
        %v1329 = vpop.f32.mrb[0].mxu0
        %v1330 = vpop.f32.mrb[0].mxu0
        %1331 = vdwg.mxu0
        %v1333 = vsel %vm1193, %v1240, 0
        %1335 = vmatprep.subr.bf16.mxu0 0
        %1336 = vmatpush1.bf16.msra.mxu0 %v1244
        %1337 = vmatprep.subr.bf16.mxu0 0
        %1338 = vmatpush1.bf16.msra.mxu0 0
        %1339 = vmatprep.subr.bf16.mxu0 0
        %1340 = vmatpush1.bf16.msra.mxu0 0
        %1341 = vmatprep.subr.bf16.mxu0 0
        %1342 = vmatpush1.bf16.msra.mxu0 0
        %1343 = vmatprep.subr.bf16.mxu0 0
        %1344 = vmatpush1.bf16.msra.mxu0 0
        %1345 = vmatprep.subr.bf16.mxu0 0
        %1346 = vmatpush1.bf16.msra.mxu0 0
        %1347 = vmatprep.subr.bf16.mxu0 0
        %1348 = vmatpush1.bf16.msra.mxu0 0
        %1349 = vmatprep.subr.bf16.mxu0 0
        %1350 = vmatpush1.bf16.msra.mxu0 0
        %1351 = vmatprep.subr.bf16.mxu0 0
        %1352 = vmatpush1.bf16.msra.mxu0 0
        %1353 = vmatprep.subr.bf16.mxu0 0
        %1354 = vmatpush1.bf16.msra.mxu0 0
        %1355 = vmatprep.subr.bf16.mxu0 0
        %1356 = vmatpush1.bf16.msra.mxu0 0
        %1357 = vmatprep.subr.bf16.mxu0 0
        %1358 = vmatpush1.bf16.msra.mxu0 0
        %1359 = vmatprep.subr.bf16.mxu0 0
        %1360 = vmatpush1.bf16.msra.mxu0 0
        %1361 = vmatprep.subr.bf16.mxu0 0
        %1362 = vmatpush1.bf16.msra.mxu0 0
        %1363 = vmatprep.subr.bf16.mxu0 0
        %1364 = vmatpush1.bf16.msra.mxu0 0
        %1365 = vmatprep.subr.bf16.mxu0 0
        %1366 = vmatpush1.bf16.msra.mxu0 0
        %1367 = vmatprep.mubr.bf16.mxu0 0
        %1368 = vmatmul.mubr.bf16.gmra.mrb[0].mxu0 %v1333
        %v1369 = vpop.f32.mrb[0].mxu0
        %v1370 = vadd.f32 0.0, %v1369
        %v1371 = vpop.f32.mrb[0].mxu0
        %v1372 = vpop.f32.mrb[0].mxu0
        %v1373 = vpop.f32.mrb[0].mxu0
        %1374 = vdwg.mxu0
        %v1376 = vsel %vm1193, %v1241, 0
        %1378 = vmatprep.subr.bf16.mxu0 0
        %1379 = vmatpush1.bf16.msra.mxu0 %v1245
        %1380 = vmatprep.subr.bf16.mxu0 0
        %1381 = vmatpush1.bf16.msra.mxu0 0
        %1382 = vmatprep.subr.bf16.mxu0 0
        %1383 = vmatpush1.bf16.msra.mxu0 0
        %1384 = vmatprep.subr.bf16.mxu0 0
        %1385 = vmatpush1.bf16.msra.mxu0 0
        %1386 = vmatprep.subr.bf16.mxu0 0
        %1387 = vmatpush1.bf16.msra.mxu0 0
        %1388 = vmatprep.subr.bf16.mxu0 0
        %1389 = vmatpush1.bf16.msra.mxu0 0
        %1390 = vmatprep.subr.bf16.mxu0 0
        %1391 = vmatpush1.bf16.msra.mxu0 0
        %1392 = vmatprep.subr.bf16.mxu0 0
        %1393 = vmatpush1.bf16.msra.mxu0 0
        %1394 = vmatprep.subr.bf16.mxu0 0
        %1395 = vmatpush1.bf16.msra.mxu0 0
        %1396 = vmatprep.subr.bf16.mxu0 0
        %1397 = vmatpush1.bf16.msra.mxu0 0
        %1398 = vmatprep.subr.bf16.mxu0 0
        %1399 = vmatpush1.bf16.msra.mxu0 0
        %1400 = vmatprep.subr.bf16.mxu0 0
        %1401 = vmatpush1.bf16.msra.mxu0 0
        %1402 = vmatprep.subr.bf16.mxu0 0
        %1403 = vmatpush1.bf16.msra.mxu0 0
        %1404 = vmatprep.subr.bf16.mxu0 0
        %1405 = vmatpush1.bf16.msra.mxu0 0
        %1406 = vmatprep.subr.bf16.mxu0 0
        %1407 = vmatpush1.bf16.msra.mxu0 0
        %1408 = vmatprep.subr.bf16.mxu0 0
        %1409 = vmatpush1.bf16.msra.mxu0 0
        %1410 = vmatprep.mubr.bf16.mxu0 0
        %1411 = vmatmul.mubr.bf16.gmra.mrb[0].mxu0 %v1376
        %v1412 = vpop.f32.mrb[0].mxu0
        %v1413 = vadd.f32 0.0, %v1412
        %v1414 = vpop.f32.mrb[0].mxu0
        %v1415 = vpop.f32.mrb[0].mxu0
        %v1416 = vpop.f32.mrb[0].mxu0
        %1417 = vdwg.mxu0
        %1419 = vrot.lane.b32.xlu0 %v1327, 8
        %v1420 = vpop.permute.xlu0 %1419
        %1423 = vrot.lane.b32.xlu0 %v1370, 16
        %v1424 = vpop.permute.xlu0 %1423
        %1427 = vrot.lane.b32.xlu0 %v1413, 24
        %v1428 = vpop.permute.xlu0 %1427
        %v1430 = vsel %vm997, %v1284, %v1420
        %v1431 = vsel %vm1193, %v1430, %v1424
        %vm1432 = vcmask 195584
        %v1433 = vsel %vm1432, %v1431, %v1428
        %v1434 = vpack.c.bf16 %v1433, %v1433
        %v1435 = vld [vmem:[%s8] sm:$0xf]
        %v1436 = vld [vmem:[%s8 + $0x4] sm:$0xf]
        %v1437 = vld [vmem:[%s8 + $0x8] sm:$0xf]
        %v1438 = vld [vmem:[%s8 + $0xc] sm:$0xf]
        %v1439 = vld [vmem:[#allocation12] sm:$0x1]
        %v1441 = vlaneseq
        %v1442 = vshrl.u32 %v1441, 7
        %v1443 = vsub.s32 0, %v1442
        %v1444 = vrot.slane %v1439, %v1443
        %v1450 = vunpack.c.l.b16 %v1435
        %v1451 = vunpack.c.l.b16 %v1436
        %v1452 = vunpack.c.l.b16 %v1437
        %v1453 = vunpack.c.l.b16 %v1438
        %v1454 = vpack.c.b16 %v1451, %v1450
        %v1455 = vpack.c.b16 %v1453, %v1452
        %v1459 = vsel %vm873, %v1434, 0
        %1461 = vmatprep.subr.bf16.mxu0 0
        %1462 = vmatpush1.bf16.msra.mxu0 %v1454
        %1463 = vmatprep.subr.bf16.mxu0 0
        %1464 = vmatpush1.bf16.msra.mxu0 %v1455
        %1465 = vmatprep.subr.bf16.mxu0 0
        %1466 = vmatpush1.bf16.msra.mxu0 0
        %1467 = vmatprep.subr.bf16.mxu0 0
        %1468 = vmatpush1.bf16.msra.mxu0 0
        %1469 = vmatprep.subr.bf16.mxu0 0
        %1470 = vmatpush1.bf16.msra.mxu0 0
        %1471 = vmatprep.subr.bf16.mxu0 0
        %1472 = vmatpush1.bf16.msra.mxu0 0
        %1473 = vmatprep.subr.bf16.mxu0 0
        %1474 = vmatpush1.bf16.msra.mxu0 0
        %1475 = vmatprep.subr.bf16.mxu0 0
        %1476 = vmatpush1.bf16.msra.mxu0 0
        %1477 = vmatprep.subr.bf16.mxu0 0
        %1478 = vmatpush1.bf16.msra.mxu0 0
        %1479 = vmatprep.subr.bf16.mxu0 0
        %1480 = vmatpush1.bf16.msra.mxu0 0
        %1481 = vmatprep.subr.bf16.mxu0 0
        %1482 = vmatpush1.bf16.msra.mxu0 0
        %1483 = vmatprep.subr.bf16.mxu0 0
        %1484 = vmatpush1.bf16.msra.mxu0 0
        %1485 = vmatprep.subr.bf16.mxu0 0
        %1486 = vmatpush1.bf16.msra.mxu0 0
        %1487 = vmatprep.subr.bf16.mxu0 0
        %1488 = vmatpush1.bf16.msra.mxu0 0
        %1489 = vmatprep.subr.bf16.mxu0 0
        %1490 = vmatpush1.bf16.msra.mxu0 0
        %1491 = vmatprep.subr.bf16.mxu0 0
        %1492 = vmatpush1.bf16.msra.mxu0 0
        %1493 = vmatprep.mubr.bf16.mxu0 0
        %1494 = vmatmul.mubr.bf16.gmra.mrb[0].mxu0 %v1459
        %v1495 = vpop.f32.mrb[0].mxu0
        %v1496 = vadd.f32 %v1444, %v1495
        %v1497 = vpop.f32.mrb[0].mxu0
        %v1498 = vpop.f32.mrb[0].mxu0
        %v1499 = vpop.f32.mrb[0].mxu0
        %1500 = vdwg.mxu0
        %v1501 = vadd.f32 %v872, %v1496
        %v1502 = vld [vmem:[#allocation13] sm:$0x1]
        %v1503 = vld [vmem:[#allocation15] sm:$0x1]
        %v1504 = vsel %vm873, %v1501, 0.0
        %1505 = vadd.xlane.f32.xlu0 %v1504
        %v1506 = vpop.xlane.xlu0 %1505
        %v1507 = vmul.f32 %v1506, %v877
        %v1508 = vsub.f32 %v1501, %v1507
        %v1509 = vmul.f32 %v1508, %v1508
        %v1510 = vsel %vm873, %v1509, 0.0
        %1511 = vadd.xlane.f32.xlu0 %v1510
        %v1512 = vpop.xlane.xlu0 %1511
        %v1513 = vmul.f32 %v1512, %v884
        %v1514 = vrsqrt.pop %v1513
        %v1515 = vmul.f32 %v1513, %v1514
        %vm1516 = vcmp.eq.f32.partialorder %v1513, inf
        %v1517 = vsel %vm1516, %v1513, %v1515
        %vm1518 = vcmp.eq.f32.partialorder %v1513, 0.0
        %v1519 = vand.u32 %v1513, 2147483648
        %v1520 = vsel %vm1518, %v1519, %v1517
        %v1521 = vadd.f32 %v1520, 1e-06
        %v1522 = vrcp.pop %v1521
        %v1523 = vmul.f32 1.0, %v1522
        %v1525 = vlaneseq
        %v1526 = vshrl.u32 %v1525, 7
        %v1527 = vsub.s32 0, %v1526
        %v1528 = vrot.slane %v1502, %v1527
        %v1530 = vmul.f32 %v1528, %v1508
        %v1531 = vmul.f32 %v1530, %v1523
        %v1533 = vlaneseq
        %v1534 = vshrl.u32 %v1533, 7
        %v1535 = vsub.s32 0, %v1534
        %v1536 = vrot.slane %v1503, %v1535
        %v1538 = vadd.f32 %v1531, %v1536
        %v1539 = vpack.c.bf16 %v1538, %v1538
        %v1540 = vld [vmem:[#allocation16] sm:$0xf]
        %v1541 = vld [vmem:[#allocation16 + $0x4] sm:$0xf]
        %v1542 = vld [vmem:[#allocation16 + $0x8] sm:$0xf]
        %v1543 = vld [vmem:[#allocation16 + $0xc] sm:$0xf]
        %v1544 = vld [vmem:[#allocation18] sm:$0x1]
        %v1546 = vlaneseq
        %v1547 = vshrl.u32 %v1546, 7
        %v1548 = vsub.s32 0, %v1547
        %v1549 = vrot.slane %v1544, %v1548
        %v1555 = vunpack.c.l.b16 %v1540
        %v1556 = vunpack.c.l.b16 %v1541
        %v1557 = vunpack.c.l.b16 %v1542
        %v1558 = vunpack.c.l.b16 %v1543
        %v1559 = vpack.c.b16 %v1556, %v1555
        %v1560 = vpack.c.b16 %v1558, %v1557
        %v1564 = vsel %vm873, %v1539, 0
        %1566 = vmatprep.subr.bf16.mxu0 0
        %1567 = vmatpush1.bf16.msra.mxu0 %v1559
        %1568 = vmatprep.subr.bf16.mxu0 0
        %1569 = vmatpush1.bf16.msra.mxu0 %v1560
        %1570 = vmatprep.subr.bf16.mxu0 0
        %1571 = vmatpush1.bf16.msra.mxu0 0
        %1572 = vmatprep.subr.bf16.mxu0 0
        %1573 = vmatpush1.bf16.msra.mxu0 0
        %1574 = vmatprep.subr.bf16.mxu0 0
        %1575 = vmatpush1.bf16.msra.mxu0 0
        %1576 = vmatprep.subr.bf16.mxu0 0
        %1577 = vmatpush1.bf16.msra.mxu0 0
        %1578 = vmatprep.subr.bf16.mxu0 0
        %1579 = vmatpush1.bf16.msra.mxu0 0
        %1580 = vmatprep.subr.bf16.mxu0 0
        %1581 = vmatpush1.bf16.msra.mxu0 0
        %1582 = vmatprep.subr.bf16.mxu0 0
        %1583 = vmatpush1.bf16.msra.mxu0 0
        %1584 = vmatprep.subr.bf16.mxu0 0
        %1585 = vmatpush1.bf16.msra.mxu0 0
        %1586 = vmatprep.subr.bf16.mxu0 0
        %1587 = vmatpush1.bf16.msra.mxu0 0
        %1588 = vmatprep.subr.bf16.mxu0 0
        %1589 = vmatpush1.bf16.msra.mxu0 0
        %1590 = vmatprep.subr.bf16.mxu0 0
        %1591 = vmatpush1.bf16.msra.mxu0 0
        %1592 = vmatprep.subr.bf16.mxu0 0
        %1593 = vmatpush1.bf16.msra.mxu0 0
        %1594 = vmatprep.subr.bf16.mxu0 0
        %1595 = vmatpush1.bf16.msra.mxu0 0
        %1596 = vmatprep.subr.bf16.mxu0 0
        %1597 = vmatpush1.bf16.msra.mxu0 0
        %1598 = vmatprep.mubr.bf16.mxu0 0
        %1599 = vmatmul.mubr.bf16.gmra.mrb[0].mxu0 %v1564
        %v1600 = vpop.f32.mrb[0].mxu0
        %v1601 = vadd.f32 %v1549, %v1600
        %v1602 = vpop.f32.mrb[0].mxu0
        %v1603 = vpop.f32.mrb[0].mxu0
        %v1604 = vpop.f32.mrb[0].mxu0
        %1605 = vdwg.mxu0
        %v1606 = vmax.f32 %v1601, 0.0
        %v1607 = vpack.c.bf16 %v1606, %v1606
        %v1608 = vld [vmem:[%s14] sm:$0xf]
        %v1609 = vld [vmem:[%s14 + $0x4] sm:$0xf]
        %v1610 = vld [vmem:[%s14 + $0x8] sm:$0xf]
        %v1611 = vld [vmem:[%s14 + $0xc] sm:$0xf]
        %v1612 = vld [vmem:[%s14 + $0x10] sm:$0xf]
        %v1613 = vld [vmem:[%s14 + $0x14] sm:$0xf]
        %v1614 = vld [vmem:[%s14 + $0x18] sm:$0xf]
        %v1615 = vld [vmem:[%s14 + $0x1c] sm:$0xf]
        %v1616 = vld [vmem:[#allocation19] sm:$0x1]
        %v1618 = vlaneseq
        %v1619 = vshrl.u32 %v1618, 7
        %v1620 = vsub.s32 0, %v1619
        %v1621 = vrot.slane %v1616, %v1620
        %v1631 = vunpack.c.l.b16 %v1608
        %v1632 = vunpack.c.l.b16 %v1609
        %v1633 = vunpack.c.l.b16 %v1610
        %v1634 = vunpack.c.l.b16 %v1611
        %v1635 = vunpack.c.l.b16 %v1612
        %v1636 = vunpack.c.l.b16 %v1613
        %v1637 = vunpack.c.l.b16 %v1614
        %v1638 = vunpack.c.l.b16 %v1615
        %v1639 = vpack.c.b16 %v1632, %v1631
        %v1640 = vpack.c.b16 %v1634, %v1633
        %v1641 = vpack.c.b16 %v1636, %v1635
        %v1642 = vpack.c.b16 %v1638, %v1637
        %vm1647 = vcmask 523264
        %v1649 = vsel %vm1647, %v1607, 0
        %1651 = vmatprep.subr.bf16.mxu0 0
        %1652 = vmatpush1.bf16.msra.mxu0 %v1639
        %1653 = vmatprep.subr.bf16.mxu0 0
        %1654 = vmatpush1.bf16.msra.mxu0 %v1640
        %1655 = vmatprep.subr.bf16.mxu0 0
        %1656 = vmatpush1.bf16.msra.mxu0 %v1641
        %1657 = vmatprep.subr.bf16.mxu0 0
        %1658 = vmatpush1.bf16.msra.mxu0 %v1642
        %1659 = vmatprep.subr.bf16.mxu0 0
        %1660 = vmatpush1.bf16.msra.mxu0 0
        %1661 = vmatprep.subr.bf16.mxu0 0
        %1662 = vmatpush1.bf16.msra.mxu0 0
        %1663 = vmatprep.subr.bf16.mxu0 0
        %1664 = vmatpush1.bf16.msra.mxu0 0
        %1665 = vmatprep.subr.bf16.mxu0 0
        %1666 = vmatpush1.bf16.msra.mxu0 0
        %1667 = vmatprep.subr.bf16.mxu0 0
        %1668 = vmatpush1.bf16.msra.mxu0 0
        %1669 = vmatprep.subr.bf16.mxu0 0
        %1670 = vmatpush1.bf16.msra.mxu0 0
        %1671 = vmatprep.subr.bf16.mxu0 0
        %1672 = vmatpush1.bf16.msra.mxu0 0
        %1673 = vmatprep.subr.bf16.mxu0 0
        %1674 = vmatpush1.bf16.msra.mxu0 0
        %1675 = vmatprep.subr.bf16.mxu0 0
        %1676 = vmatpush1.bf16.msra.mxu0 0
        %1677 = vmatprep.subr.bf16.mxu0 0
        %1678 = vmatpush1.bf16.msra.mxu0 0
        %1679 = vmatprep.subr.bf16.mxu0 0
        %1680 = vmatpush1.bf16.msra.mxu0 0
        %1681 = vmatprep.subr.bf16.mxu0 0
        %1682 = vmatpush1.bf16.msra.mxu0 0
        %1683 = vmatprep.mubr.bf16.mxu0 0
        %1684 = vmatmul.mubr.bf16.gmra.mrb[0].mxu0 %v1649
        %v1685 = vpop.f32.mrb[0].mxu0
        %v1686 = vadd.f32 %v1621, %v1685
        %v1687 = vpop.f32.mrb[0].mxu0
        %v1688 = vpop.f32.mrb[0].mxu0
        %v1689 = vpop.f32.mrb[0].mxu0
        %1690 = vdwg.mxu0
        %v1691 = vadd.f32 %v1501, %v1686
        %1692 = vst.msk [vmem:[%s677] sm:$0xff] %vm873, %v1691
        %s1693 = sand.u32 %s406, 1
        %s1694 = scalar_lea.sflag [#allocation6], %s1693
        %s1695 = sand.u32 %s406, 1
        %s1696 = smul.addr %s1695, 8
        %s1697 = scalar_lea.vmem [#allocation21], %s1696
        // Predicated region
        $region129: #{encoder_layer.1} parent=83 // pred_check
          %p1698 = pneg %p416
        $region130: #{encoder_layer.1} parent=83 // pred_check_branch
          %1700 = sbr.rel (%p1698) target = $region132
        $region131: #{encoder_layer.1} parent=83 // pred_region
          %s1702 = ssub.s32 128, 128
          %1703 = vsyncadd %s1694, %s1702
          %s1704 = smul.addr %s42, 2
          %s1705 = sadd.s32 %s43, %s1704
          %s1706 = smul.addr %s1705, 128
          %s1707 = scalar_lea.hbm %s16, %s1706
          %s1709 = sshll.u32 %s1697, 4
          %s1710 = int_to_ptr.vmem [resolvable:$true] %s1709
          %1712 = dma.vmem_to_hbm [thread:$0]  %s1710, 128, %s1707, %s1694
        $region132: #{encoder_layer.1} parent=83 // pred_fallthru
          _
      $region84: #{encoder_layer.1} parent=5 // pred_fallthru
        _
      %p1713 = scmp.le.s32.totalorder 2, %s33
      // Predicated region
      $region133: #{encoder_layer.1} parent=5 // pred_check
        %p1714 = pneg %p1713
      $region134: #{encoder_layer.1} parent=5 // pred_check_branch
        %1716 = sbr.rel (%p1714) target = $region136
      $region135: #{encoder_layer.1} parent=5 // pred_region
        %s1717 = ssub.s32 %s33, 2
        // Predicated region
        $region137: #{encoder_layer.1} parent=135 // pred_check
          %p1718 = pneg %p422
        $region138: #{encoder_layer.1} parent=135 // pred_check_branch
          %1720 = sbr.rel (%p1718) target = $region140
        $region139: #{encoder_layer.1} parent=135 // pred_region
          %s1721 = sand.u32 %s407, 1
          %s1722 = scalar_lea.sflag [#allocation6], %s1721
          %s1723 = sand.u32 %s407, 1
          %s1724 = smul.addr %s1723, 8
          %s1725 = scalar_lea.vmem [#allocation21], %s1724
          %1726 = dma.done %s1722, 128
        $region140: #{encoder_layer.1} parent=135 // pred_fallthru
          _
      $region136: #{encoder_layer.1} parent=5 // pred_fallthru
        _
    $region6: #{encoder_layer.1} parent=1 // loop_footer
      %s37 = sadd.s32 1, %s33
    $region7: #{encoder_layer.1} parent=1 // loop_footer_branch
      %32 = sbr.rel target = $region3
    $region8: #{encoder_layer.1} parent=1 // loop_exit
      _
    %1727 = vsyncpa [#allocation5], 1
    %s1728 = scalar_lea.sflag [#allocation5], 1
    %1729 = vsyncpa %s1728, 1
    %1730 = vsyncpa [#allocation8], 1
    %1731 = vsyncpa [#allocation11], 1
    %1732 = vsyncpa [#allocation14], 1
    %1733 = vsyncpa [#allocation17], 1
    %1734 = vsyncpa [#allocation20], 1
    %1735 = vsyncpa [#allocation6], 1
    %s1736 = scalar_lea.sflag [#allocation6], 1
    %1737 = vsyncpa %s1736, 1

</llo_original>
